<compile_context>
chip_gen: v5e
topology: v5e:2x2
jax: 0.10.0
libtpu: 0.0.40
codegen_flags: <defaults>
</compile_context>

<pallas_src>
from functools import partial

import jax
import jax.numpy as jnp
from jax import lax
from jax.experimental import pallas as pl
from jax.experimental.pallas import tpu as pltpu


# ---------------------------------------------------------------------------
# Fused kernel: fixed-point attention loop + out_proj + residual + tanh
# ---------------------------------------------------------------------------
def _fpsa_fused_kernel(x_ref, wqk_ref, bqk_ref, wout_ref, bout_ref, o_ref,
                       *, num_heads, head_dim, max_iter, eps):
    # x_ref   : VMEM (1, N, C)   -- input x for this batch element
    # wqk_ref : VMEM (C, 2C)     -- [W_q | W_k]^T, q columns pre-scaled by scale/temp
    # bqk_ref : VMEM (1, 2C)     -- [b_q*scale/temp | b_k]
    # wout_ref: VMEM (C, C)      -- out_proj weight^T
    # bout_ref: VMEM (1, C)      -- out_proj bias
    # o_ref   : VMEM (1, N, C)   -- final output
    H, D = num_heads, head_dim
    C = H * D

    x = x_ref[0]                                 # (N, C)
    wqk = wqk_ref[...]                           # (C, 2C) -- resident across the loop
    bqk = bqk_ref[...]                           # (1, 2C)

    # Values come straight from x (reference discards the V projection).
    v_heads = [x[:, h * D:(h + 1) * D] for h in range(H)]   # H x (N, D)

    eps_sq = float(eps) * float(eps)

    def step(z):
        # qkv projection (q/k only), bias added via (1,2C) broadcast.
        qk = jnp.dot(z, wqk, preferred_element_type=jnp.float32) + bqk   # (N, 2C)
        outs = []
        # Static per-head loop (H small). 3-D head-batched einsum is avoided on
        # purpose: head_dim=16 minor-dim reshapes/transposes are relayout-heavy
        # and riskier to lower than H tiny 2-D dots at these shapes.
        for h in range(H):
            q = qk[:, h * D:(h + 1) * D]                  # (N, D), already scaled
            k = qk[:, C + h * D:C + (h + 1) * D]          # (N, D)
            # q @ k^T without an explicit transpose: contract the D axis.
            s = lax.dot_general(q, k, (((1,), (1,)), ((), ())),
                                preferred_element_type=jnp.float32)       # (N, N)
            # numerically stable softmax, divide -> EUP reciprocal multiply
            s = s - jnp.max(s, axis=-1, keepdims=True)
            p = jnp.exp(s)
            p = p * pl.reciprocal(jnp.sum(p, axis=-1, keepdims=True), approx=True)
            outs.append(jnp.dot(p, v_heads[h], preferred_element_type=jnp.float32))
        z_next = jnp.concatenate(outs, axis=-1)            # (N, C) lane-dense slab
        return jnp.tanh(z_next)                            # normalize = Tanh()

    def body(_, carry):
        z, done = carry                                    # z: (N,C) f32, done: (1,1) i32
        z_new = step(z)
        d = z_new - z
        # per-sample squared Frobenius residual, kept 2-D for TPU lowering
        r = jnp.sum(jnp.sum(d * d, axis=0, keepdims=True), axis=1, keepdims=True)
        # Freeze the iterate once converged (equivalent result to early exit).
        z_out = jnp.where(done > 0, z, z_new)
        done = jnp.maximum(done, (r < eps_sq).astype(jnp.int32))
        return z_out, done

    # TODO(synk): FixedPointIteration source not provided; forward iteration with
    # per-sample ||z_{k+1}-z_k|| < eps stopping (iterate frozen after convergence).
    z_star, _ = lax.fori_loop(0, max_iter, body,
                              (x, jnp.zeros((1, 1), jnp.int32)), unroll=True)

    # Fused epilogue: out_proj + residual + tanh (z_star is still in vregs/VMEM).
    y = jnp.dot(z_star, wout_ref[...], preferred_element_type=jnp.float32) + bout_ref[...]
    o_ref[0] = jnp.tanh(y + x)


# ---------------------------------------------------------------------------
# Full module forward
# ---------------------------------------------------------------------------
@partial(jax.jit, static_argnames=("num_heads", "max_iter", "eps"))
def fixed_point_self_attention(x, temperature, w_qkv_t, b_qkv, w_out_t, b_out,
                               *, num_heads, max_iter=10, eps=1e-6):
    B, N, C = x.shape
    head_dim = C // num_heads

    # Fold (head_dim^-0.5 / temperature[h]) into the q columns of the weight /
    # bias on the host: zero in-kernel scaling cost, mathematically identical.
    scale = head_dim ** -0.5
    col_scale = jnp.repeat(scale / temperature, head_dim)            # (C,)
    w_qk = jnp.concatenate(
        [w_qkv_t[:, :C] * col_scale[None, :], w_qkv_t[:, C:2 * C]], axis=1)   # (C, 2C)
    b_qk = jnp.concatenate([b_qkv[:C] * col_scale, b_qkv[C:2 * C]])[None, :]  # (1, 2C)
    b_out2 = b_out[None, :]                                                   # (1, C)

    kern = partial(_fpsa_fused_kernel, num_heads=num_heads, head_dim=head_dim,
                   max_iter=max_iter, eps=float(eps))
    return pl.pallas_call(
        kern,
        out_shape=jax.ShapeDtypeStruct((B, N, C), jnp.float32),
        grid=(B,),
        in_specs=[
            pl.BlockSpec((1, N, C), lambda b: (b, 0, 0)),      # x
            pl.BlockSpec((C, 2 * C), lambda b: (0, 0)),        # W_qk (pre-scaled)
            pl.BlockSpec((1, 2 * C), lambda b: (0, 0)),        # b_qk
            pl.BlockSpec((C, C), lambda b: (0, 0)),            # W_out^T
            pl.BlockSpec((1, C), lambda b: (0, 0)),            # b_out
        ],
        out_specs=pl.BlockSpec((1, N, C), lambda b: (b, 0, 0)),
        compiler_params=pltpu.CompilerParams(dimension_semantics=("parallel",)),
    )(x, w_qk, b_qk, w_out_t, b_out2)


# ---------------------------------------------------------------------------
# Driver
# ---------------------------------------------------------------------------
if __name__ == "__main__":
    B, N, C, H = 2, 8, 32, 2   # batch, seq, embed_dim, num_heads
    key = jax.random.PRNGKey(0)
    kx, kw, kwo, kbo = jax.random.split(key, 4)

    x = jax.random.normal(kx, (B, N, C), dtype=jnp.float32)

    # qkv: orthogonal weight (3C, C), zero bias  (as in _init_weights)
    W_qkv = jax.nn.initializers.orthogonal()(kw, (3 * C, C), jnp.float32)
    w_qkv_t = jnp.asarray(W_qkv).T                     # (C, 3C)
    b_qkv = jnp.zeros((3 * C,), jnp.float32)

    # temperature: ones(num_heads)  (non-flash step)
    temperature = jnp.ones((H,), jnp.float32)

    # out_proj: nn.Linear default uniform init
    bound = 1.0 / (C ** 0.5)
    W_out = jax.random.uniform(kwo, (C, C), jnp.float32, -bound, bound)
    b_out = jax.random.uniform(kbo, (C,), jnp.float32, -bound, bound)
    w_out_t = W_out.T

    out = fixed_point_self_attention(x, temperature, w_qkv_t, b_qkv,
                                     w_out_t, b_out,
                                     num_heads=H, max_iter=10, eps=1e-6)
    jax.block_until_ready(out)
    assert out.shape == (B, N, C)
    print("KERNEL_OK")
</pallas_src>

<mosaic_0001>
module attributes {stable_mosaic.version = 11 : i64} {
  func.func @_fpsa_fused_kernel(%arg0: i32, %arg1: memref<1x8x32xf32, #tpu.memory_space<vmem>>, %arg2: memref<32x64xf32, #tpu.memory_space<vmem>>, %arg3: memref<1x64xf32, #tpu.memory_space<vmem>>, %arg4: memref<32x32xf32, #tpu.memory_space<vmem>>, %arg5: memref<1x32xf32, #tpu.memory_space<vmem>>, %arg6: memref<1x8x32xf32, #tpu.memory_space<vmem>>) attributes {dimension_semantics = [#tpu.dimension_semantics<parallel>], iteration_bounds = array<i64: 2>, scalar_prefetch = 0 : i64, scratch_operands = 0 : i64, tpu.core_type = #tpu.core_type<tc>, window_params = [{transform_indices = @transform_0, window_bounds = array<i64: 1, 8, 32>}, {pipeline_mode = #tpu.pipeline_mode<synchronous>, transform_indices = @transform_1, window_bounds = array<i64: 32, 64>}, {pipeline_mode = #tpu.pipeline_mode<synchronous>, transform_indices = @transform_2, window_bounds = array<i64: 1, 64>}, {pipeline_mode = #tpu.pipeline_mode<synchronous>, transform_indices = @transform_3, window_bounds = array<i64: 32, 32>}, {pipeline_mode = #tpu.pipeline_mode<synchronous>, transform_indices = @transform_4, window_bounds = array<i64: 1, 32>}, {transform_indices = @transform_5, window_bounds = array<i64: 1, 8, 32>}]} {
    %c0 = arith.constant 0 : index
    %c0_0 = arith.constant 0 : index
    %c0_1 = arith.constant 0 : index
    %0 = vector.load %arg1[%c0, %c0_0, %c0_1] : memref<1x8x32xf32, #tpu.memory_space<vmem>>, vector<1x8x32xf32>
    %1 = vector.shape_cast %0 : vector<1x8x32xf32> to vector<8x32xf32>
    %c0_2 = arith.constant 0 : index
    %c0_3 = arith.constant 0 : index
    %2 = vector.load %arg2[%c0_2, %c0_3] : memref<32x64xf32, #tpu.memory_space<vmem>>, vector<32x64xf32>
    %c0_4 = arith.constant 0 : index
    %c0_5 = arith.constant 0 : index
    %3 = vector.load %arg3[%c0_4, %c0_5] : memref<1x64xf32, #tpu.memory_space<vmem>>, vector<1x64xf32>
    %4 = vector.extract_strided_slice %1 {offsets = [0, 0], sizes = [8, 16], strides = [1, 1]} : vector<8x32xf32> to vector<8x16xf32>
    %5 = vector.extract_strided_slice %1 {offsets = [0, 16], sizes = [8, 16], strides = [1, 1]} : vector<8x32xf32> to vector<8x16xf32>
    %c0_i32 = arith.constant 0 : i32
    %6 = vector.broadcast %c0_i32 : i32 to vector<1x1xi32>
    %c0_i32_6 = arith.constant 0 : i32
    %cst = arith.constant dense<0.000000e+00> : vector<8x64xf32>
    %7 = tpu.matmul %1, %2, %cst {dimension_numbers = #tpu.dot_dimension_numbers<[1], [0], [0], [1], [0, 0, 1, 1], [], []>} : vector<8x32xf32>, vector<32x64xf32>, vector<8x64xf32> -> vector<8x64xf32>
    %8 = vector.broadcast %3 : vector<1x64xf32> to vector<8x64xf32>
    %9 = arith.addf %7, %8 : vector<8x64xf32>
    %10 = vector.extract_strided_slice %9 {offsets = [0, 0], sizes = [8, 16], strides = [1, 1]} : vector<8x64xf32> to vector<8x16xf32>
    %11 = vector.extract_strided_slice %9 {offsets = [0, 32], sizes = [8, 16], strides = [1, 1]} : vector<8x64xf32> to vector<8x16xf32>
    %cst_7 = arith.constant dense<0.000000e+00> : vector<8x8xf32>
    %12 = tpu.matmul %10, %11, %cst_7 {dimension_numbers = #tpu.dot_dimension_numbers<[1], [1], [0], [0], [0, 0, 1, 0], [], []>} : vector<8x16xf32>, vector<8x16xf32>, vector<8x8xf32> -> vector<8x8xf32>
    %cst_8 = arith.constant dense<0xFF800000> : vector<8xf32>
    %13 = vector.multi_reduction <maximumf>, %12, %cst_8 [1] : vector<8x8xf32> to vector<8xf32>
    %14 = vector.shape_cast %13 : vector<8xf32> to vector<8x1xf32>
    %15 = vector.broadcast %14 : vector<8x1xf32> to vector<8x8xf32>
    %16 = arith.subf %12, %15 : vector<8x8xf32>
    %17 = math.exp %16 : vector<8x8xf32>
    %cst_9 = arith.constant dense<0.000000e+00> : vector<8xf32>
    %18 = vector.multi_reduction <add>, %17, %cst_9 [1] : vector<8x8xf32> to vector<8xf32>
    %19 = vector.shape_cast %18 : vector<8xf32> to vector<8x1xf32>
    %20 = tpu.reciprocal %19 {approx = true} : vector<8x1xf32> -> vector<8x1xf32>
    %21 = vector.broadcast %20 : vector<8x1xf32> to vector<8x8xf32>
    %22 = arith.mulf %17, %21 : vector<8x8xf32>
    %cst_10 = arith.constant dense<0.000000e+00> : vector<8x16xf32>
    %23 = tpu.matmul %22, %4, %cst_10 {dimension_numbers = #tpu.dot_dimension_numbers<[1], [0], [0], [1], [0, 0, 1, 1], [], []>} : vector<8x8xf32>, vector<8x16xf32>, vector<8x16xf32> -> vector<8x16xf32>
    %24 = vector.extract_strided_slice %9 {offsets = [0, 16], sizes = [8, 16], strides = [1, 1]} : vector<8x64xf32> to vector<8x16xf32>
    %25 = vector.extract_strided_slice %9 {offsets = [0, 48], sizes = [8, 16], strides = [1, 1]} : vector<8x64xf32> to vector<8x16xf32>
    %cst_11 = arith.constant dense<0.000000e+00> : vector<8x8xf32>
    %26 = tpu.matmul %24, %25, %cst_11 {dimension_numbers = #tpu.dot_dimension_numbers<[1], [1], [0], [0], [0, 0, 1, 0], [], []>} : vector<8x16xf32>, vector<8x16xf32>, vector<8x8xf32> -> vector<8x8xf32>
    %cst_12 = arith.constant dense<0xFF800000> : vector<8xf32>
    %27 = vector.multi_reduction <maximumf>, %26, %cst_12 [1] : vector<8x8xf32> to vector<8xf32>
    %28 = vector.shape_cast %27 : vector<8xf32> to vector<8x1xf32>
    %29 = vector.broadcast %28 : vector<8x1xf32> to vector<8x8xf32>
    %30 = arith.subf %26, %29 : vector<8x8xf32>
    %31 = math.exp %30 : vector<8x8xf32>
    %cst_13 = arith.constant dense<0.000000e+00> : vector<8xf32>
    %32 = vector.multi_reduction <add>, %31, %cst_13 [1] : vector<8x8xf32> to vector<8xf32>
    %33 = vector.shape_cast %32 : vector<8xf32> to vector<8x1xf32>
    %34 = tpu.reciprocal %33 {approx = true} : vector<8x1xf32> -> vector<8x1xf32>
    %35 = vector.broadcast %34 : vector<8x1xf32> to vector<8x8xf32>
    %36 = arith.mulf %31, %35 : vector<8x8xf32>
    %cst_14 = arith.constant dense<0.000000e+00> : vector<8x16xf32>
    %37 = tpu.matmul %36, %5, %cst_14 {dimension_numbers = #tpu.dot_dimension_numbers<[1], [0], [0], [1], [0, 0, 1, 1], [], []>} : vector<8x8xf32>, vector<8x16xf32>, vector<8x16xf32> -> vector<8x16xf32>
    %38 = tpu.concatenate %23, %37 in 1 : vector<8x16xf32>, vector<8x16xf32> -> vector<8x32xf32>
    %39 = math.tanh %38 : vector<8x32xf32>
    %40 = arith.subf %39, %1 : vector<8x32xf32>
    %41 = arith.mulf %40, %40 : vector<8x32xf32>
    %cst_15 = arith.constant dense<0.000000e+00> : vector<32xf32>
    %42 = vector.multi_reduction <add>, %41, %cst_15 [0] : vector<8x32xf32> to vector<32xf32>
    %43 = vector.shape_cast %42 : vector<32xf32> to vector<1x32xf32>
    %cst_16 = arith.constant dense<0.000000e+00> : vector<1xf32>
    %44 = vector.multi_reduction <add>, %43, %cst_16 [1] : vector<1x32xf32> to vector<1xf32>
    %45 = vector.shape_cast %44 : vector<1xf32> to vector<1x1xf32>
    %c0_i32_17 = arith.constant 0 : i32
    %46 = vector.broadcast %c0_i32_17 : i32 to vector<1x1xi32>
    %47 = arith.cmpi sgt, %6, %46 : vector<1x1xi32>
    %48 = vector.shape_cast %47 : vector<1x1xi1> to vector<1x1xi1>
    %49 = vector.broadcast %48 : vector<1x1xi1> to vector<8x32xi1>
    %50 = arith.select %49, %1, %39 : vector<8x32xi1>, vector<8x32xf32>
    %cst_18 = arith.constant 9.99999996E-13 : f32
    %51 = vector.broadcast %cst_18 : f32 to vector<1x1xf32>
    %52 = arith.cmpf olt, %45, %51 : vector<1x1xf32>
    %53 = arith.extui %52 : vector<1x1xi1> to vector<1x1xi32>
    %54 = arith.maxsi %6, %53 : vector<1x1xi32>
    %c1_i32 = arith.constant 1 : i32
    %cst_19 = arith.constant dense<0.000000e+00> : vector<8x64xf32>
    %55 = tpu.matmul %50, %2, %cst_19 {dimension_numbers = #tpu.dot_dimension_numbers<[1], [0], [0], [1], [0, 0, 1, 1], [], []>} : vector<8x32xf32>, vector<32x64xf32>, vector<8x64xf32> -> vector<8x64xf32>
    %56 = vector.broadcast %3 : vector<1x64xf32> to vector<8x64xf32>
    %57 = arith.addf %55, %56 : vector<8x64xf32>
    %58 = vector.extract_strided_slice %57 {offsets = [0, 0], sizes = [8, 16], strides = [1, 1]} : vector<8x64xf32> to vector<8x16xf32>
    %59 = vector.extract_strided_slice %57 {offsets = [0, 32], sizes = [8, 16], strides = [1, 1]} : vector<8x64xf32> to vector<8x16xf32>
    %cst_20 = arith.constant dense<0.000000e+00> : vector<8x8xf32>
    %60 = tpu.matmul %58, %59, %cst_20 {dimension_numbers = #tpu.dot_dimension_numbers<[1], [1], [0], [0], [0, 0, 1, 0], [], []>} : vector<8x16xf32>, vector<8x16xf32>, vector<8x8xf32> -> vector<8x8xf32>
    %cst_21 = arith.constant dense<0xFF800000> : vector<8xf32>
    %61 = vector.multi_reduction <maximumf>, %60, %cst_21 [1] : vector<8x8xf32> to vector<8xf32>
    %62 = vector.shape_cast %61 : vector<8xf32> to vector<8x1xf32>
    %63 = vector.broadcast %62 : vector<8x1xf32> to vector<8x8xf32>
    %64 = arith.subf %60, %63 : vector<8x8xf32>
    %65 = math.exp %64 : vector<8x8xf32>
    %cst_22 = arith.constant dense<0.000000e+00> : vector<8xf32>
    %66 = vector.multi_reduction <add>, %65, %cst_22 [1] : vector<8x8xf32> to vector<8xf32>
    %67 = vector.shape_cast %66 : vector<8xf32> to vector<8x1xf32>
    %68 = tpu.reciprocal %67 {approx = true} : vector<8x1xf32> -> vector<8x1xf32>
    %69 = vector.broadcast %68 : vector<8x1xf32> to vector<8x8xf32>
    %70 = arith.mulf %65, %69 : vector<8x8xf32>
    %cst_23 = arith.constant dense<0.000000e+00> : vector<8x16xf32>
    %71 = tpu.matmul %70, %4, %cst_23 {dimension_numbers = #tpu.dot_dimension_numbers<[1], [0], [0], [1], [0, 0, 1, 1], [], []>} : vector<8x8xf32>, vector<8x16xf32>, vector<8x16xf32> -> vector<8x16xf32>
    %72 = vector.extract_strided_slice %57 {offsets = [0, 16], sizes = [8, 16], strides = [1, 1]} : vector<8x64xf32> to vector<8x16xf32>
    %73 = vector.extract_strided_slice %57 {offsets = [0, 48], sizes = [8, 16], strides = [1, 1]} : vector<8x64xf32> to vector<8x16xf32>
    %cst_24 = arith.constant dense<0.000000e+00> : vector<8x8xf32>
    %74 = tpu.matmul %72, %73, %cst_24 {dimension_numbers = #tpu.dot_dimension_numbers<[1], [1], [0], [0], [0, 0, 1, 0], [], []>} : vector<8x16xf32>, vector<8x16xf32>, vector<8x8xf32> -> vector<8x8xf32>
    %cst_25 = arith.constant dense<0xFF800000> : vector<8xf32>
    %75 = vector.multi_reduction <maximumf>, %74, %cst_25 [1] : vector<8x8xf32> to vector<8xf32>
    %76 = vector.shape_cast %75 : vector<8xf32> to vector<8x1xf32>
    %77 = vector.broadcast %76 : vector<8x1xf32> to vector<8x8xf32>
    %78 = arith.subf %74, %77 : vector<8x8xf32>
    %79 = math.exp %78 : vector<8x8xf32>
    %cst_26 = arith.constant dense<0.000000e+00> : vector<8xf32>
    %80 = vector.multi_reduction <add>, %79, %cst_26 [1] : vector<8x8xf32> to vector<8xf32>
    %81 = vector.shape_cast %80 : vector<8xf32> to vector<8x1xf32>
    %82 = tpu.reciprocal %81 {approx = true} : vector<8x1xf32> -> vector<8x1xf32>
    %83 = vector.broadcast %82 : vector<8x1xf32> to vector<8x8xf32>
    %84 = arith.mulf %79, %83 : vector<8x8xf32>
    %cst_27 = arith.constant dense<0.000000e+00> : vector<8x16xf32>
    %85 = tpu.matmul %84, %5, %cst_27 {dimension_numbers = #tpu.dot_dimension_numbers<[1], [0], [0], [1], [0, 0, 1, 1], [], []>} : vector<8x8xf32>, vector<8x16xf32>, vector<8x16xf32> -> vector<8x16xf32>
    %86 = tpu.concatenate %71, %85 in 1 : vector<8x16xf32>, vector<8x16xf32> -> vector<8x32xf32>
    %87 = math.tanh %86 : vector<8x32xf32>
    %88 = arith.subf %87, %50 : vector<8x32xf32>
    %89 = arith.mulf %88, %88 : vector<8x32xf32>
    %cst_28 = arith.constant dense<0.000000e+00> : vector<32xf32>
    %90 = vector.multi_reduction <add>, %89, %cst_28 [0] : vector<8x32xf32> to vector<32xf32>
    %91 = vector.shape_cast %90 : vector<32xf32> to vector<1x32xf32>
    %cst_29 = arith.constant dense<0.000000e+00> : vector<1xf32>
    %92 = vector.multi_reduction <add>, %91, %cst_29 [1] : vector<1x32xf32> to vector<1xf32>
    %93 = vector.shape_cast %92 : vector<1xf32> to vector<1x1xf32>
    %c0_i32_30 = arith.constant 0 : i32
    %94 = vector.broadcast %c0_i32_30 : i32 to vector<1x1xi32>
    %95 = arith.cmpi sgt, %54, %94 : vector<1x1xi32>
    %96 = vector.shape_cast %95 : vector<1x1xi1> to vector<1x1xi1>
    %97 = vector.broadcast %96 : vector<1x1xi1> to vector<8x32xi1>
    %98 = arith.select %97, %50, %87 : vector<8x32xi1>, vector<8x32xf32>
    %cst_31 = arith.constant 9.99999996E-13 : f32
    %99 = vector.broadcast %cst_31 : f32 to vector<1x1xf32>
    %100 = arith.cmpf olt, %93, %99 : vector<1x1xf32>
    %101 = arith.extui %100 : vector<1x1xi1> to vector<1x1xi32>
    %102 = arith.maxsi %54, %101 : vector<1x1xi32>
    %c2_i32 = arith.constant 2 : i32
    %cst_32 = arith.constant dense<0.000000e+00> : vector<8x64xf32>
    %103 = tpu.matmul %98, %2, %cst_32 {dimension_numbers = #tpu.dot_dimension_numbers<[1], [0], [0], [1], [0, 0, 1, 1], [], []>} : vector<8x32xf32>, vector<32x64xf32>, vector<8x64xf32> -> vector<8x64xf32>
    %104 = vector.broadcast %3 : vector<1x64xf32> to vector<8x64xf32>
    %105 = arith.addf %103, %104 : vector<8x64xf32>
    %106 = vector.extract_strided_slice %105 {offsets = [0, 0], sizes = [8, 16], strides = [1, 1]} : vector<8x64xf32> to vector<8x16xf32>
    %107 = vector.extract_strided_slice %105 {offsets = [0, 32], sizes = [8, 16], strides = [1, 1]} : vector<8x64xf32> to vector<8x16xf32>
    %cst_33 = arith.constant dense<0.000000e+00> : vector<8x8xf32>
    %108 = tpu.matmul %106, %107, %cst_33 {dimension_numbers = #tpu.dot_dimension_numbers<[1], [1], [0], [0], [0, 0, 1, 0], [], []>} : vector<8x16xf32>, vector<8x16xf32>, vector<8x8xf32> -> vector<8x8xf32>
    %cst_34 = arith.constant dense<0xFF800000> : vector<8xf32>
    %109 = vector.multi_reduction <maximumf>, %108, %cst_34 [1] : vector<8x8xf32> to vector<8xf32>
    %110 = vector.shape_cast %109 : vector<8xf32> to vector<8x1xf32>
    %111 = vector.broadcast %110 : vector<8x1xf32> to vector<8x8xf32>
    %112 = arith.subf %108, %111 : vector<8x8xf32>
    %113 = math.exp %112 : vector<8x8xf32>
    %cst_35 = arith.constant dense<0.000000e+00> : vector<8xf32>
    %114 = vector.multi_reduction <add>, %113, %cst_35 [1] : vector<8x8xf32> to vector<8xf32>
    %115 = vector.shape_cast %114 : vector<8xf32> to vector<8x1xf32>
    %116 = tpu.reciprocal %115 {approx = true} : vector<8x1xf32> -> vector<8x1xf32>
    %117 = vector.broadcast %116 : vector<8x1xf32> to vector<8x8xf32>
    %118 = arith.mulf %113, %117 : vector<8x8xf32>
    %cst_36 = arith.constant dense<0.000000e+00> : vector<8x16xf32>
    %119 = tpu.matmul %118, %4, %cst_36 {dimension_numbers = #tpu.dot_dimension_numbers<[1], [0], [0], [1], [0, 0, 1, 1], [], []>} : vector<8x8xf32>, vector<8x16xf32>, vector<8x16xf32> -> vector<8x16xf32>
    %120 = vector.extract_strided_slice %105 {offsets = [0, 16], sizes = [8, 16], strides = [1, 1]} : vector<8x64xf32> to vector<8x16xf32>
    %121 = vector.extract_strided_slice %105 {offsets = [0, 48], sizes = [8, 16], strides = [1, 1]} : vector<8x64xf32> to vector<8x16xf32>
    %cst_37 = arith.constant dense<0.000000e+00> : vector<8x8xf32>
    %122 = tpu.matmul %120, %121, %cst_37 {dimension_numbers = #tpu.dot_dimension_numbers<[1], [1], [0], [0], [0, 0, 1, 0], [], []>} : vector<8x16xf32>, vector<8x16xf32>, vector<8x8xf32> -> vector<8x8xf32>
    %cst_38 = arith.constant dense<0xFF800000> : vector<8xf32>
    %123 = vector.multi_reduction <maximumf>, %122, %cst_38 [1] : vector<8x8xf32> to vector<8xf32>
    %124 = vector.shape_cast %123 : vector<8xf32> to vector<8x1xf32>
    %125 = vector.broadcast %124 : vector<8x1xf32> to vector<8x8xf32>
    %126 = arith.subf %122, %125 : vector<8x8xf32>
    %127 = math.exp %126 : vector<8x8xf32>
    %cst_39 = arith.constant dense<0.000000e+00> : vector<8xf32>
    %128 = vector.multi_reduction <add>, %127, %cst_39 [1] : vector<8x8xf32> to vector<8xf32>
    %129 = vector.shape_cast %128 : vector<8xf32> to vector<8x1xf32>
    %130 = tpu.reciprocal %129 {approx = true} : vector<8x1xf32> -> vector<8x1xf32>
    %131 = vector.broadcast %130 : vector<8x1xf32> to vector<8x8xf32>
    %132 = arith.mulf %127, %131 : vector<8x8xf32>
    %cst_40 = arith.constant dense<0.000000e+00> : vector<8x16xf32>
    %133 = tpu.matmul %132, %5, %cst_40 {dimension_numbers = #tpu.dot_dimension_numbers<[1], [0], [0], [1], [0, 0, 1, 1], [], []>} : vector<8x8xf32>, vector<8x16xf32>, vector<8x16xf32> -> vector<8x16xf32>
    %134 = tpu.concatenate %119, %133 in 1 : vector<8x16xf32>, vector<8x16xf32> -> vector<8x32xf32>
    %135 = math.tanh %134 : vector<8x32xf32>
    %136 = arith.subf %135, %98 : vector<8x32xf32>
    %137 = arith.mulf %136, %136 : vector<8x32xf32>
    %cst_41 = arith.constant dense<0.000000e+00> : vector<32xf32>
    %138 = vector.multi_reduction <add>, %137, %cst_41 [0] : vector<8x32xf32> to vector<32xf32>
    %139 = vector.shape_cast %138 : vector<32xf32> to vector<1x32xf32>
    %cst_42 = arith.constant dense<0.000000e+00> : vector<1xf32>
    %140 = vector.multi_reduction <add>, %139, %cst_42 [1] : vector<1x32xf32> to vector<1xf32>
    %141 = vector.shape_cast %140 : vector<1xf32> to vector<1x1xf32>
    %c0_i32_43 = arith.constant 0 : i32
    %142 = vector.broadcast %c0_i32_43 : i32 to vector<1x1xi32>
    %143 = arith.cmpi sgt, %102, %142 : vector<1x1xi32>
    %144 = vector.shape_cast %143 : vector<1x1xi1> to vector<1x1xi1>
    %145 = vector.broadcast %144 : vector<1x1xi1> to vector<8x32xi1>
    %146 = arith.select %145, %98, %135 : vector<8x32xi1>, vector<8x32xf32>
    %cst_44 = arith.constant 9.99999996E-13 : f32
    %147 = vector.broadcast %cst_44 : f32 to vector<1x1xf32>
    %148 = arith.cmpf olt, %141, %147 : vector<1x1xf32>
    %149 = arith.extui %148 : vector<1x1xi1> to vector<1x1xi32>
    %150 = arith.maxsi %102, %149 : vector<1x1xi32>
    %c3_i32 = arith.constant 3 : i32
    %cst_45 = arith.constant dense<0.000000e+00> : vector<8x64xf32>
    %151 = tpu.matmul %146, %2, %cst_45 {dimension_numbers = #tpu.dot_dimension_numbers<[1], [0], [0], [1], [0, 0, 1, 1], [], []>} : vector<8x32xf32>, vector<32x64xf32>, vector<8x64xf32> -> vector<8x64xf32>
    %152 = vector.broadcast %3 : vector<1x64xf32> to vector<8x64xf32>
    %153 = arith.addf %151, %152 : vector<8x64xf32>
    %154 = vector.extract_strided_slice %153 {offsets = [0, 0], sizes = [8, 16], strides = [1, 1]} : vector<8x64xf32> to vector<8x16xf32>
    %155 = vector.extract_strided_slice %153 {offsets = [0, 32], sizes = [8, 16], strides = [1, 1]} : vector<8x64xf32> to vector<8x16xf32>
    %cst_46 = arith.constant dense<0.000000e+00> : vector<8x8xf32>
    %156 = tpu.matmul %154, %155, %cst_46 {dimension_numbers = #tpu.dot_dimension_numbers<[1], [1], [0], [0], [0, 0, 1, 0], [], []>} : vector<8x16xf32>, vector<8x16xf32>, vector<8x8xf32> -> vector<8x8xf32>
    %cst_47 = arith.constant dense<0xFF800000> : vector<8xf32>
    %157 = vector.multi_reduction <maximumf>, %156, %cst_47 [1] : vector<8x8xf32> to vector<8xf32>
    %158 = vector.shape_cast %157 : vector<8xf32> to vector<8x1xf32>
    %159 = vector.broadcast %158 : vector<8x1xf32> to vector<8x8xf32>
    %160 = arith.subf %156, %159 : vector<8x8xf32>
    %161 = math.exp %160 : vector<8x8xf32>
    %cst_48 = arith.constant dense<0.000000e+00> : vector<8xf32>
    %162 = vector.multi_reduction <add>, %161, %cst_48 [1] : vector<8x8xf32> to vector<8xf32>
    %163 = vector.shape_cast %162 : vector<8xf32> to vector<8x1xf32>
    %164 = tpu.reciprocal %163 {approx = true} : vector<8x1xf32> -> vector<8x1xf32>
    %165 = vector.broadcast %164 : vector<8x1xf32> to vector<8x8xf32>
    %166 = arith.mulf %161, %165 : vector<8x8xf32>
    %cst_49 = arith.constant dense<0.000000e+00> : vector<8x16xf32>
    %167 = tpu.matmul %166, %4, %cst_49 {dimension_numbers = #tpu.dot_dimension_numbers<[1], [0], [0], [1], [0, 0, 1, 1], [], []>} : vector<8x8xf32>, vector<8x16xf32>, vector<8x16xf32> -> vector<8x16xf32>
    %168 = vector.extract_strided_slice %153 {offsets = [0, 16], sizes = [8, 16], strides = [1, 1]} : vector<8x64xf32> to vector<8x16xf32>
    %169 = vector.extract_strided_slice %153 {offsets = [0, 48], sizes = [8, 16], strides = [1, 1]} : vector<8x64xf32> to vector<8x16xf32>
    %cst_50 = arith.constant dense<0.000000e+00> : vector<8x8xf32>
    %170 = tpu.matmul %168, %169, %cst_50 {dimension_numbers = #tpu.dot_dimension_numbers<[1], [1], [0], [0], [0, 0, 1, 0], [], []>} : vector<8x16xf32>, vector<8x16xf32>, vector<8x8xf32> -> vector<8x8xf32>
    %cst_51 = arith.constant dense<0xFF800000> : vector<8xf32>
    %171 = vector.multi_reduction <maximumf>, %170, %cst_51 [1] : vector<8x8xf32> to vector<8xf32>
    %172 = vector.shape_cast %171 : vector<8xf32> to vector<8x1xf32>
    %173 = vector.broadcast %172 : vector<8x1xf32> to vector<8x8xf32>
    %174 = arith.subf %170, %173 : vector<8x8xf32>
    %175 = math.exp %174 : vector<8x8xf32>
    %cst_52 = arith.constant dense<0.000000e+00> : vector<8xf32>
    %176 = vector.multi_reduction <add>, %175, %cst_52 [1] : vector<8x8xf32> to vector<8xf32>
    %177 = vector.shape_cast %176 : vector<8xf32> to vector<8x1xf32>
    %178 = tpu.reciprocal %177 {approx = true} : vector<8x1xf32> -> vector<8x1xf32>
    %179 = vector.broadcast %178 : vector<8x1xf32> to vector<8x8xf32>
    %180 = arith.mulf %175, %179 : vector<8x8xf32>
    %cst_53 = arith.constant dense<0.000000e+00> : vector<8x16xf32>
    %181 = tpu.matmul %180, %5, %cst_53 {dimension_numbers = #tpu.dot_dimension_numbers<[1], [0], [0], [1], [0, 0, 1, 1], [], []>} : vector<8x8xf32>, vector<8x16xf32>, vector<8x16xf32> -> vector<8x16xf32>
    %182 = tpu.concatenate %167, %181 in 1 : vector<8x16xf32>, vector<8x16xf32> -> vector<8x32xf32>
    %183 = math.tanh %182 : vector<8x32xf32>
    %184 = arith.subf %183, %146 : vector<8x32xf32>
    %185 = arith.mulf %184, %184 : vector<8x32xf32>
    %cst_54 = arith.constant dense<0.000000e+00> : vector<32xf32>
    %186 = vector.multi_reduction <add>, %185, %cst_54 [0] : vector<8x32xf32> to vector<32xf32>
    %187 = vector.shape_cast %186 : vector<32xf32> to vector<1x32xf32>
    %cst_55 = arith.constant dense<0.000000e+00> : vector<1xf32>
    %188 = vector.multi_reduction <add>, %187, %cst_55 [1] : vector<1x32xf32> to vector<1xf32>
    %189 = vector.shape_cast %188 : vector<1xf32> to vector<1x1xf32>
    %c0_i32_56 = arith.constant 0 : i32
    %190 = vector.broadcast %c0_i32_56 : i32 to vector<1x1xi32>
    %191 = arith.cmpi sgt, %150, %190 : vector<1x1xi32>
    %192 = vector.shape_cast %191 : vector<1x1xi1> to vector<1x1xi1>
    %193 = vector.broadcast %192 : vector<1x1xi1> to vector<8x32xi1>
    %194 = arith.select %193, %146, %183 : vector<8x32xi1>, vector<8x32xf32>
    %cst_57 = arith.constant 9.99999996E-13 : f32
    %195 = vector.broadcast %cst_57 : f32 to vector<1x1xf32>
    %196 = arith.cmpf olt, %189, %195 : vector<1x1xf32>
    %197 = arith.extui %196 : vector<1x1xi1> to vector<1x1xi32>
    %198 = arith.maxsi %150, %197 : vector<1x1xi32>
    %c4_i32 = arith.constant 4 : i32
    %cst_58 = arith.constant dense<0.000000e+00> : vector<8x64xf32>
    %199 = tpu.matmul %194, %2, %cst_58 {dimension_numbers = #tpu.dot_dimension_numbers<[1], [0], [0], [1], [0, 0, 1, 1], [], []>} : vector<8x32xf32>, vector<32x64xf32>, vector<8x64xf32> -> vector<8x64xf32>
    %200 = vector.broadcast %3 : vector<1x64xf32> to vector<8x64xf32>
    %201 = arith.addf %199, %200 : vector<8x64xf32>
    %202 = vector.extract_strided_slice %201 {offsets = [0, 0], sizes = [8, 16], strides = [1, 1]} : vector<8x64xf32> to vector<8x16xf32>
    %203 = vector.extract_strided_slice %201 {offsets = [0, 32], sizes = [8, 16], strides = [1, 1]} : vector<8x64xf32> to vector<8x16xf32>
    %cst_59 = arith.constant dense<0.000000e+00> : vector<8x8xf32>
    %204 = tpu.matmul %202, %203, %cst_59 {dimension_numbers = #tpu.dot_dimension_numbers<[1], [1], [0], [0], [0, 0, 1, 0], [], []>} : vector<8x16xf32>, vector<8x16xf32>, vector<8x8xf32> -> vector<8x8xf32>
    %cst_60 = arith.constant dense<0xFF800000> : vector<8xf32>
    %205 = vector.multi_reduction <maximumf>, %204, %cst_60 [1] : vector<8x8xf32> to vector<8xf32>
    %206 = vector.shape_cast %205 : vector<8xf32> to vector<8x1xf32>
    %207 = vector.broadcast %206 : vector<8x1xf32> to vector<8x8xf32>
    %208 = arith.subf %204, %207 : vector<8x8xf32>
    %209 = math.exp %208 : vector<8x8xf32>
    %cst_61 = arith.constant dense<0.000000e+00> : vector<8xf32>
    %210 = vector.multi_reduction <add>, %209, %cst_61 [1] : vector<8x8xf32> to vector<8xf32>
    %211 = vector.shape_cast %210 : vector<8xf32> to vector<8x1xf32>
    %212 = tpu.reciprocal %211 {approx = true} : vector<8x1xf32> -> vector<8x1xf32>
    %213 = vector.broadcast %212 : vector<8x1xf32> to vector<8x8xf32>
    %214 = arith.mulf %209, %213 : vector<8x8xf32>
    %cst_62 = arith.constant dense<0.000000e+00> : vector<8x16xf32>
    %215 = tpu.matmul %214, %4, %cst_62 {dimension_numbers = #tpu.dot_dimension_numbers<[1], [0], [0], [1], [0, 0, 1, 1], [], []>} : vector<8x8xf32>, vector<8x16xf32>, vector<8x16xf32> -> vector<8x16xf32>
    %216 = vector.extract_strided_slice %201 {offsets = [0, 16], sizes = [8, 16], strides = [1, 1]} : vector<8x64xf32> to vector<8x16xf32>
    %217 = vector.extract_strided_slice %201 {offsets = [0, 48], sizes = [8, 16], strides = [1, 1]} : vector<8x64xf32> to vector<8x16xf32>
    %cst_63 = arith.constant dense<0.000000e+00> : vector<8x8xf32>
    %218 = tpu.matmul %216, %217, %cst_63 {dimension_numbers = #tpu.dot_dimension_numbers<[1], [1], [0], [0], [0, 0, 1, 0], [], []>} : vector<8x16xf32>, vector<8x16xf32>, vector<8x8xf32> -> vector<8x8xf32>
    %cst_64 = arith.constant dense<0xFF800000> : vector<8xf32>
    %219 = vector.multi_reduction <maximumf>, %218, %cst_64 [1] : vector<8x8xf32> to vector<8xf32>
    %220 = vector.shape_cast %219 : vector<8xf32> to vector<8x1xf32>
    %221 = vector.broadcast %220 : vector<8x1xf32> to vector<8x8xf32>
    %222 = arith.subf %218, %221 : vector<8x8xf32>
    %223 = math.exp %222 : vector<8x8xf32>
    %cst_65 = arith.constant dense<0.000000e+00> : vector<8xf32>
    %224 = vector.multi_reduction <add>, %223, %cst_65 [1] : vector<8x8xf32> to vector<8xf32>
    %225 = vector.shape_cast %224 : vector<8xf32> to vector<8x1xf32>
    %226 = tpu.reciprocal %225 {approx = true} : vector<8x1xf32> -> vector<8x1xf32>
    %227 = vector.broadcast %226 : vector<8x1xf32> to vector<8x8xf32>
    %228 = arith.mulf %223, %227 : vector<8x8xf32>
    %cst_66 = arith.constant dense<0.000000e+00> : vector<8x16xf32>
    %229 = tpu.matmul %228, %5, %cst_66 {dimension_numbers = #tpu.dot_dimension_numbers<[1], [0], [0], [1], [0, 0, 1, 1], [], []>} : vector<8x8xf32>, vector<8x16xf32>, vector<8x16xf32> -> vector<8x16xf32>
    %230 = tpu.concatenate %215, %229 in 1 : vector<8x16xf32>, vector<8x16xf32> -> vector<8x32xf32>
    %231 = math.tanh %230 : vector<8x32xf32>
    %232 = arith.subf %231, %194 : vector<8x32xf32>
    %233 = arith.mulf %232, %232 : vector<8x32xf32>
    %cst_67 = arith.constant dense<0.000000e+00> : vector<32xf32>
    %234 = vector.multi_reduction <add>, %233, %cst_67 [0] : vector<8x32xf32> to vector<32xf32>
    %235 = vector.shape_cast %234 : vector<32xf32> to vector<1x32xf32>
    %cst_68 = arith.constant dense<0.000000e+00> : vector<1xf32>
    %236 = vector.multi_reduction <add>, %235, %cst_68 [1] : vector<1x32xf32> to vector<1xf32>
    %237 = vector.shape_cast %236 : vector<1xf32> to vector<1x1xf32>
    %c0_i32_69 = arith.constant 0 : i32
    %238 = vector.broadcast %c0_i32_69 : i32 to vector<1x1xi32>
    %239 = arith.cmpi sgt, %198, %238 : vector<1x1xi32>
    %240 = vector.shape_cast %239 : vector<1x1xi1> to vector<1x1xi1>
    %241 = vector.broadcast %240 : vector<1x1xi1> to vector<8x32xi1>
    %242 = arith.select %241, %194, %231 : vector<8x32xi1>, vector<8x32xf32>
    %cst_70 = arith.constant 9.99999996E-13 : f32
    %243 = vector.broadcast %cst_70 : f32 to vector<1x1xf32>
    %244 = arith.cmpf olt, %237, %243 : vector<1x1xf32>
    %245 = arith.extui %244 : vector<1x1xi1> to vector<1x1xi32>
    %246 = arith.maxsi %198, %245 : vector<1x1xi32>
    %c5_i32 = arith.constant 5 : i32
    %cst_71 = arith.constant dense<0.000000e+00> : vector<8x64xf32>
    %247 = tpu.matmul %242, %2, %cst_71 {dimension_numbers = #tpu.dot_dimension_numbers<[1], [0], [0], [1], [0, 0, 1, 1], [], []>} : vector<8x32xf32>, vector<32x64xf32>, vector<8x64xf32> -> vector<8x64xf32>
    %248 = vector.broadcast %3 : vector<1x64xf32> to vector<8x64xf32>
    %249 = arith.addf %247, %248 : vector<8x64xf32>
    %250 = vector.extract_strided_slice %249 {offsets = [0, 0], sizes = [8, 16], strides = [1, 1]} : vector<8x64xf32> to vector<8x16xf32>
    %251 = vector.extract_strided_slice %249 {offsets = [0, 32], sizes = [8, 16], strides = [1, 1]} : vector<8x64xf32> to vector<8x16xf32>
    %cst_72 = arith.constant dense<0.000000e+00> : vector<8x8xf32>
    %252 = tpu.matmul %250, %251, %cst_72 {dimension_numbers = #tpu.dot_dimension_numbers<[1], [1], [0], [0], [0, 0, 1, 0], [], []>} : vector<8x16xf32>, vector<8x16xf32>, vector<8x8xf32> -> vector<8x8xf32>
    %cst_73 = arith.constant dense<0xFF800000> : vector<8xf32>
    %253 = vector.multi_reduction <maximumf>, %252, %cst_73 [1] : vector<8x8xf32> to vector<8xf32>
    %254 = vector.shape_cast %253 : vector<8xf32> to vector<8x1xf32>
    %255 = vector.broadcast %254 : vector<8x1xf32> to vector<8x8xf32>
    %256 = arith.subf %252, %255 : vector<8x8xf32>
    %257 = math.exp %256 : vector<8x8xf32>
    %cst_74 = arith.constant dense<0.000000e+00> : vector<8xf32>
    %258 = vector.multi_reduction <add>, %257, %cst_74 [1] : vector<8x8xf32> to vector<8xf32>
    %259 = vector.shape_cast %258 : vector<8xf32> to vector<8x1xf32>
    %260 = tpu.reciprocal %259 {approx = true} : vector<8x1xf32> -> vector<8x1xf32>
    %261 = vector.broadcast %260 : vector<8x1xf32> to vector<8x8xf32>
    %262 = arith.mulf %257, %261 : vector<8x8xf32>
    %cst_75 = arith.constant dense<0.000000e+00> : vector<8x16xf32>
    %263 = tpu.matmul %262, %4, %cst_75 {dimension_numbers = #tpu.dot_dimension_numbers<[1], [0], [0], [1], [0, 0, 1, 1], [], []>} : vector<8x8xf32>, vector<8x16xf32>, vector<8x16xf32> -> vector<8x16xf32>
    %264 = vector.extract_strided_slice %249 {offsets = [0, 16], sizes = [8, 16], strides = [1, 1]} : vector<8x64xf32> to vector<8x16xf32>
    %265 = vector.extract_strided_slice %249 {offsets = [0, 48], sizes = [8, 16], strides = [1, 1]} : vector<8x64xf32> to vector<8x16xf32>
    %cst_76 = arith.constant dense<0.000000e+00> : vector<8x8xf32>
    %266 = tpu.matmul %264, %265, %cst_76 {dimension_numbers = #tpu.dot_dimension_numbers<[1], [1], [0], [0], [0, 0, 1, 0], [], []>} : vector<8x16xf32>, vector<8x16xf32>, vector<8x8xf32> -> vector<8x8xf32>
    %cst_77 = arith.constant dense<0xFF800000> : vector<8xf32>
    %267 = vector.multi_reduction <maximumf>, %266, %cst_77 [1] : vector<8x8xf32> to vector<8xf32>
    %268 = vector.shape_cast %267 : vector<8xf32> to vector<8x1xf32>
    %269 = vector.broadcast %268 : vector<8x1xf32> to vector<8x8xf32>
    %270 = arith.subf %266, %269 : vector<8x8xf32>
    %271 = math.exp %270 : vector<8x8xf32>
    %cst_78 = arith.constant dense<0.000000e+00> : vector<8xf32>
    %272 = vector.multi_reduction <add>, %271, %cst_78 [1] : vector<8x8xf32> to vector<8xf32>
    %273 = vector.shape_cast %272 : vector<8xf32> to vector<8x1xf32>
    %274 = tpu.reciprocal %273 {approx = true} : vector<8x1xf32> -> vector<8x1xf32>
    %275 = vector.broadcast %274 : vector<8x1xf32> to vector<8x8xf32>
    %276 = arith.mulf %271, %275 : vector<8x8xf32>
    %cst_79 = arith.constant dense<0.000000e+00> : vector<8x16xf32>
    %277 = tpu.matmul %276, %5, %cst_79 {dimension_numbers = #tpu.dot_dimension_numbers<[1], [0], [0], [1], [0, 0, 1, 1], [], []>} : vector<8x8xf32>, vector<8x16xf32>, vector<8x16xf32> -> vector<8x16xf32>
    %278 = tpu.concatenate %263, %277 in 1 : vector<8x16xf32>, vector<8x16xf32> -> vector<8x32xf32>
    %279 = math.tanh %278 : vector<8x32xf32>
    %280 = arith.subf %279, %242 : vector<8x32xf32>
    %281 = arith.mulf %280, %280 : vector<8x32xf32>
    %cst_80 = arith.constant dense<0.000000e+00> : vector<32xf32>
    %282 = vector.multi_reduction <add>, %281, %cst_80 [0] : vector<8x32xf32> to vector<32xf32>
    %283 = vector.shape_cast %282 : vector<32xf32> to vector<1x32xf32>
    %cst_81 = arith.constant dense<0.000000e+00> : vector<1xf32>
    %284 = vector.multi_reduction <add>, %283, %cst_81 [1] : vector<1x32xf32> to vector<1xf32>
    %285 = vector.shape_cast %284 : vector<1xf32> to vector<1x1xf32>
    %c0_i32_82 = arith.constant 0 : i32
    %286 = vector.broadcast %c0_i32_82 : i32 to vector<1x1xi32>
    %287 = arith.cmpi sgt, %246, %286 : vector<1x1xi32>
    %288 = vector.shape_cast %287 : vector<1x1xi1> to vector<1x1xi1>
    %289 = vector.broadcast %288 : vector<1x1xi1> to vector<8x32xi1>
    %290 = arith.select %289, %242, %279 : vector<8x32xi1>, vector<8x32xf32>
    %cst_83 = arith.constant 9.99999996E-13 : f32
    %291 = vector.broadcast %cst_83 : f32 to vector<1x1xf32>
    %292 = arith.cmpf olt, %285, %291 : vector<1x1xf32>
    %293 = arith.extui %292 : vector<1x1xi1> to vector<1x1xi32>
    %294 = arith.maxsi %246, %293 : vector<1x1xi32>
    %c6_i32 = arith.constant 6 : i32
    %cst_84 = arith.constant dense<0.000000e+00> : vector<8x64xf32>
    %295 = tpu.matmul %290, %2, %cst_84 {dimension_numbers = #tpu.dot_dimension_numbers<[1], [0], [0], [1], [0, 0, 1, 1], [], []>} : vector<8x32xf32>, vector<32x64xf32>, vector<8x64xf32> -> vector<8x64xf32>
    %296 = vector.broadcast %3 : vector<1x64xf32> to vector<8x64xf32>
    %297 = arith.addf %295, %296 : vector<8x64xf32>
    %298 = vector.extract_strided_slice %297 {offsets = [0, 0], sizes = [8, 16], strides = [1, 1]} : vector<8x64xf32> to vector<8x16xf32>
    %299 = vector.extract_strided_slice %297 {offsets = [0, 32], sizes = [8, 16], strides = [1, 1]} : vector<8x64xf32> to vector<8x16xf32>
    %cst_85 = arith.constant dense<0.000000e+00> : vector<8x8xf32>
    %300 = tpu.matmul %298, %299, %cst_85 {dimension_numbers = #tpu.dot_dimension_numbers<[1], [1], [0], [0], [0, 0, 1, 0], [], []>} : vector<8x16xf32>, vector<8x16xf32>, vector<8x8xf32> -> vector<8x8xf32>
    %cst_86 = arith.constant dense<0xFF800000> : vector<8xf32>
    %301 = vector.multi_reduction <maximumf>, %300, %cst_86 [1] : vector<8x8xf32> to vector<8xf32>
    %302 = vector.shape_cast %301 : vector<8xf32> to vector<8x1xf32>
    %303 = vector.broadcast %302 : vector<8x1xf32> to vector<8x8xf32>
    %304 = arith.subf %300, %303 : vector<8x8xf32>
    %305 = math.exp %304 : vector<8x8xf32>
    %cst_87 = arith.constant dense<0.000000e+00> : vector<8xf32>
    %306 = vector.multi_reduction <add>, %305, %cst_87 [1] : vector<8x8xf32> to vector<8xf32>
    %307 = vector.shape_cast %306 : vector<8xf32> to vector<8x1xf32>
    %308 = tpu.reciprocal %307 {approx = true} : vector<8x1xf32> -> vector<8x1xf32>
    %309 = vector.broadcast %308 : vector<8x1xf32> to vector<8x8xf32>
    %310 = arith.mulf %305, %309 : vector<8x8xf32>
    %cst_88 = arith.constant dense<0.000000e+00> : vector<8x16xf32>
    %311 = tpu.matmul %310, %4, %cst_88 {dimension_numbers = #tpu.dot_dimension_numbers<[1], [0], [0], [1], [0, 0, 1, 1], [], []>} : vector<8x8xf32>, vector<8x16xf32>, vector<8x16xf32> -> vector<8x16xf32>
    %312 = vector.extract_strided_slice %297 {offsets = [0, 16], sizes = [8, 16], strides = [1, 1]} : vector<8x64xf32> to vector<8x16xf32>
    %313 = vector.extract_strided_slice %297 {offsets = [0, 48], sizes = [8, 16], strides = [1, 1]} : vector<8x64xf32> to vector<8x16xf32>
    %cst_89 = arith.constant dense<0.000000e+00> : vector<8x8xf32>
    %314 = tpu.matmul %312, %313, %cst_89 {dimension_numbers = #tpu.dot_dimension_numbers<[1], [1], [0], [0], [0, 0, 1, 0], [], []>} : vector<8x16xf32>, vector<8x16xf32>, vector<8x8xf32> -> vector<8x8xf32>
    %cst_90 = arith.constant dense<0xFF800000> : vector<8xf32>
    %315 = vector.multi_reduction <maximumf>, %314, %cst_90 [1] : vector<8x8xf32> to vector<8xf32>
    %316 = vector.shape_cast %315 : vector<8xf32> to vector<8x1xf32>
    %317 = vector.broadcast %316 : vector<8x1xf32> to vector<8x8xf32>
    %318 = arith.subf %314, %317 : vector<8x8xf32>
    %319 = math.exp %318 : vector<8x8xf32>
    %cst_91 = arith.constant dense<0.000000e+00> : vector<8xf32>
    %320 = vector.multi_reduction <add>, %319, %cst_91 [1] : vector<8x8xf32> to vector<8xf32>
    %321 = vector.shape_cast %320 : vector<8xf32> to vector<8x1xf32>
    %322 = tpu.reciprocal %321 {approx = true} : vector<8x1xf32> -> vector<8x1xf32>
    %323 = vector.broadcast %322 : vector<8x1xf32> to vector<8x8xf32>
    %324 = arith.mulf %319, %323 : vector<8x8xf32>
    %cst_92 = arith.constant dense<0.000000e+00> : vector<8x16xf32>
    %325 = tpu.matmul %324, %5, %cst_92 {dimension_numbers = #tpu.dot_dimension_numbers<[1], [0], [0], [1], [0, 0, 1, 1], [], []>} : vector<8x8xf32>, vector<8x16xf32>, vector<8x16xf32> -> vector<8x16xf32>
    %326 = tpu.concatenate %311, %325 in 1 : vector<8x16xf32>, vector<8x16xf32> -> vector<8x32xf32>
    %327 = math.tanh %326 : vector<8x32xf32>
    %328 = arith.subf %327, %290 : vector<8x32xf32>
    %329 = arith.mulf %328, %328 : vector<8x32xf32>
    %cst_93 = arith.constant dense<0.000000e+00> : vector<32xf32>
    %330 = vector.multi_reduction <add>, %329, %cst_93 [0] : vector<8x32xf32> to vector<32xf32>
    %331 = vector.shape_cast %330 : vector<32xf32> to vector<1x32xf32>
    %cst_94 = arith.constant dense<0.000000e+00> : vector<1xf32>
    %332 = vector.multi_reduction <add>, %331, %cst_94 [1] : vector<1x32xf32> to vector<1xf32>
    %333 = vector.shape_cast %332 : vector<1xf32> to vector<1x1xf32>
    %c0_i32_95 = arith.constant 0 : i32
    %334 = vector.broadcast %c0_i32_95 : i32 to vector<1x1xi32>
    %335 = arith.cmpi sgt, %294, %334 : vector<1x1xi32>
    %336 = vector.shape_cast %335 : vector<1x1xi1> to vector<1x1xi1>
    %337 = vector.broadcast %336 : vector<1x1xi1> to vector<8x32xi1>
    %338 = arith.select %337, %290, %327 : vector<8x32xi1>, vector<8x32xf32>
    %cst_96 = arith.constant 9.99999996E-13 : f32
    %339 = vector.broadcast %cst_96 : f32 to vector<1x1xf32>
    %340 = arith.cmpf olt, %333, %339 : vector<1x1xf32>
    %341 = arith.extui %340 : vector<1x1xi1> to vector<1x1xi32>
    %342 = arith.maxsi %294, %341 : vector<1x1xi32>
    %c7_i32 = arith.constant 7 : i32
    %cst_97 = arith.constant dense<0.000000e+00> : vector<8x64xf32>
    %343 = tpu.matmul %338, %2, %cst_97 {dimension_numbers = #tpu.dot_dimension_numbers<[1], [0], [0], [1], [0, 0, 1, 1], [], []>} : vector<8x32xf32>, vector<32x64xf32>, vector<8x64xf32> -> vector<8x64xf32>
    %344 = vector.broadcast %3 : vector<1x64xf32> to vector<8x64xf32>
    %345 = arith.addf %343, %344 : vector<8x64xf32>
    %346 = vector.extract_strided_slice %345 {offsets = [0, 0], sizes = [8, 16], strides = [1, 1]} : vector<8x64xf32> to vector<8x16xf32>
    %347 = vector.extract_strided_slice %345 {offsets = [0, 32], sizes = [8, 16], strides = [1, 1]} : vector<8x64xf32> to vector<8x16xf32>
    %cst_98 = arith.constant dense<0.000000e+00> : vector<8x8xf32>
    %348 = tpu.matmul %346, %347, %cst_98 {dimension_numbers = #tpu.dot_dimension_numbers<[1], [1], [0], [0], [0, 0, 1, 0], [], []>} : vector<8x16xf32>, vector<8x16xf32>, vector<8x8xf32> -> vector<8x8xf32>
    %cst_99 = arith.constant dense<0xFF800000> : vector<8xf32>
    %349 = vector.multi_reduction <maximumf>, %348, %cst_99 [1] : vector<8x8xf32> to vector<8xf32>
    %350 = vector.shape_cast %349 : vector<8xf32> to vector<8x1xf32>
    %351 = vector.broadcast %350 : vector<8x1xf32> to vector<8x8xf32>
    %352 = arith.subf %348, %351 : vector<8x8xf32>
    %353 = math.exp %352 : vector<8x8xf32>
    %cst_100 = arith.constant dense<0.000000e+00> : vector<8xf32>
    %354 = vector.multi_reduction <add>, %353, %cst_100 [1] : vector<8x8xf32> to vector<8xf32>
    %355 = vector.shape_cast %354 : vector<8xf32> to vector<8x1xf32>
    %356 = tpu.reciprocal %355 {approx = true} : vector<8x1xf32> -> vector<8x1xf32>
    %357 = vector.broadcast %356 : vector<8x1xf32> to vector<8x8xf32>
    %358 = arith.mulf %353, %357 : vector<8x8xf32>
    %cst_101 = arith.constant dense<0.000000e+00> : vector<8x16xf32>
    %359 = tpu.matmul %358, %4, %cst_101 {dimension_numbers = #tpu.dot_dimension_numbers<[1], [0], [0], [1], [0, 0, 1, 1], [], []>} : vector<8x8xf32>, vector<8x16xf32>, vector<8x16xf32> -> vector<8x16xf32>
    %360 = vector.extract_strided_slice %345 {offsets = [0, 16], sizes = [8, 16], strides = [1, 1]} : vector<8x64xf32> to vector<8x16xf32>
    %361 = vector.extract_strided_slice %345 {offsets = [0, 48], sizes = [8, 16], strides = [1, 1]} : vector<8x64xf32> to vector<8x16xf32>
    %cst_102 = arith.constant dense<0.000000e+00> : vector<8x8xf32>
    %362 = tpu.matmul %360, %361, %cst_102 {dimension_numbers = #tpu.dot_dimension_numbers<[1], [1], [0], [0], [0, 0, 1, 0], [], []>} : vector<8x16xf32>, vector<8x16xf32>, vector<8x8xf32> -> vector<8x8xf32>
    %cst_103 = arith.constant dense<0xFF800000> : vector<8xf32>
    %363 = vector.multi_reduction <maximumf>, %362, %cst_103 [1] : vector<8x8xf32> to vector<8xf32>
    %364 = vector.shape_cast %363 : vector<8xf32> to vector<8x1xf32>
    %365 = vector.broadcast %364 : vector<8x1xf32> to vector<8x8xf32>
    %366 = arith.subf %362, %365 : vector<8x8xf32>
    %367 = math.exp %366 : vector<8x8xf32>
    %cst_104 = arith.constant dense<0.000000e+00> : vector<8xf32>
    %368 = vector.multi_reduction <add>, %367, %cst_104 [1] : vector<8x8xf32> to vector<8xf32>
    %369 = vector.shape_cast %368 : vector<8xf32> to vector<8x1xf32>
    %370 = tpu.reciprocal %369 {approx = true} : vector<8x1xf32> -> vector<8x1xf32>
    %371 = vector.broadcast %370 : vector<8x1xf32> to vector<8x8xf32>
    %372 = arith.mulf %367, %371 : vector<8x8xf32>
    %cst_105 = arith.constant dense<0.000000e+00> : vector<8x16xf32>
    %373 = tpu.matmul %372, %5, %cst_105 {dimension_numbers = #tpu.dot_dimension_numbers<[1], [0], [0], [1], [0, 0, 1, 1], [], []>} : vector<8x8xf32>, vector<8x16xf32>, vector<8x16xf32> -> vector<8x16xf32>
    %374 = tpu.concatenate %359, %373 in 1 : vector<8x16xf32>, vector<8x16xf32> -> vector<8x32xf32>
    %375 = math.tanh %374 : vector<8x32xf32>
    %376 = arith.subf %375, %338 : vector<8x32xf32>
    %377 = arith.mulf %376, %376 : vector<8x32xf32>
    %cst_106 = arith.constant dense<0.000000e+00> : vector<32xf32>
    %378 = vector.multi_reduction <add>, %377, %cst_106 [0] : vector<8x32xf32> to vector<32xf32>
    %379 = vector.shape_cast %378 : vector<32xf32> to vector<1x32xf32>
    %cst_107 = arith.constant dense<0.000000e+00> : vector<1xf32>
    %380 = vector.multi_reduction <add>, %379, %cst_107 [1] : vector<1x32xf32> to vector<1xf32>
    %381 = vector.shape_cast %380 : vector<1xf32> to vector<1x1xf32>
    %c0_i32_108 = arith.constant 0 : i32
    %382 = vector.broadcast %c0_i32_108 : i32 to vector<1x1xi32>
    %383 = arith.cmpi sgt, %342, %382 : vector<1x1xi32>
    %384 = vector.shape_cast %383 : vector<1x1xi1> to vector<1x1xi1>
    %385 = vector.broadcast %384 : vector<1x1xi1> to vector<8x32xi1>
    %386 = arith.select %385, %338, %375 : vector<8x32xi1>, vector<8x32xf32>
    %cst_109 = arith.constant 9.99999996E-13 : f32
    %387 = vector.broadcast %cst_109 : f32 to vector<1x1xf32>
    %388 = arith.cmpf olt, %381, %387 : vector<1x1xf32>
    %389 = arith.extui %388 : vector<1x1xi1> to vector<1x1xi32>
    %390 = arith.maxsi %342, %389 : vector<1x1xi32>
    %c8_i32 = arith.constant 8 : i32
    %cst_110 = arith.constant dense<0.000000e+00> : vector<8x64xf32>
    %391 = tpu.matmul %386, %2, %cst_110 {dimension_numbers = #tpu.dot_dimension_numbers<[1], [0], [0], [1], [0, 0, 1, 1], [], []>} : vector<8x32xf32>, vector<32x64xf32>, vector<8x64xf32> -> vector<8x64xf32>
    %392 = vector.broadcast %3 : vector<1x64xf32> to vector<8x64xf32>
    %393 = arith.addf %391, %392 : vector<8x64xf32>
    %394 = vector.extract_strided_slice %393 {offsets = [0, 0], sizes = [8, 16], strides = [1, 1]} : vector<8x64xf32> to vector<8x16xf32>
    %395 = vector.extract_strided_slice %393 {offsets = [0, 32], sizes = [8, 16], strides = [1, 1]} : vector<8x64xf32> to vector<8x16xf32>
    %cst_111 = arith.constant dense<0.000000e+00> : vector<8x8xf32>
    %396 = tpu.matmul %394, %395, %cst_111 {dimension_numbers = #tpu.dot_dimension_numbers<[1], [1], [0], [0], [0, 0, 1, 0], [], []>} : vector<8x16xf32>, vector<8x16xf32>, vector<8x8xf32> -> vector<8x8xf32>
    %cst_112 = arith.constant dense<0xFF800000> : vector<8xf32>
    %397 = vector.multi_reduction <maximumf>, %396, %cst_112 [1] : vector<8x8xf32> to vector<8xf32>
    %398 = vector.shape_cast %397 : vector<8xf32> to vector<8x1xf32>
    %399 = vector.broadcast %398 : vector<8x1xf32> to vector<8x8xf32>
    %400 = arith.subf %396, %399 : vector<8x8xf32>
    %401 = math.exp %400 : vector<8x8xf32>
    %cst_113 = arith.constant dense<0.000000e+00> : vector<8xf32>
    %402 = vector.multi_reduction <add>, %401, %cst_113 [1] : vector<8x8xf32> to vector<8xf32>
    %403 = vector.shape_cast %402 : vector<8xf32> to vector<8x1xf32>
    %404 = tpu.reciprocal %403 {approx = true} : vector<8x1xf32> -> vector<8x1xf32>
    %405 = vector.broadcast %404 : vector<8x1xf32> to vector<8x8xf32>
    %406 = arith.mulf %401, %405 : vector<8x8xf32>
    %cst_114 = arith.constant dense<0.000000e+00> : vector<8x16xf32>
    %407 = tpu.matmul %406, %4, %cst_114 {dimension_numbers = #tpu.dot_dimension_numbers<[1], [0], [0], [1], [0, 0, 1, 1], [], []>} : vector<8x8xf32>, vector<8x16xf32>, vector<8x16xf32> -> vector<8x16xf32>
    %408 = vector.extract_strided_slice %393 {offsets = [0, 16], sizes = [8, 16], strides = [1, 1]} : vector<8x64xf32> to vector<8x16xf32>
    %409 = vector.extract_strided_slice %393 {offsets = [0, 48], sizes = [8, 16], strides = [1, 1]} : vector<8x64xf32> to vector<8x16xf32>
    %cst_115 = arith.constant dense<0.000000e+00> : vector<8x8xf32>
    %410 = tpu.matmul %408, %409, %cst_115 {dimension_numbers = #tpu.dot_dimension_numbers<[1], [1], [0], [0], [0, 0, 1, 0], [], []>} : vector<8x16xf32>, vector<8x16xf32>, vector<8x8xf32> -> vector<8x8xf32>
    %cst_116 = arith.constant dense<0xFF800000> : vector<8xf32>
    %411 = vector.multi_reduction <maximumf>, %410, %cst_116 [1] : vector<8x8xf32> to vector<8xf32>
    %412 = vector.shape_cast %411 : vector<8xf32> to vector<8x1xf32>
    %413 = vector.broadcast %412 : vector<8x1xf32> to vector<8x8xf32>
    %414 = arith.subf %410, %413 : vector<8x8xf32>
    %415 = math.exp %414 : vector<8x8xf32>
    %cst_117 = arith.constant dense<0.000000e+00> : vector<8xf32>
    %416 = vector.multi_reduction <add>, %415, %cst_117 [1] : vector<8x8xf32> to vector<8xf32>
    %417 = vector.shape_cast %416 : vector<8xf32> to vector<8x1xf32>
    %418 = tpu.reciprocal %417 {approx = true} : vector<8x1xf32> -> vector<8x1xf32>
    %419 = vector.broadcast %418 : vector<8x1xf32> to vector<8x8xf32>
    %420 = arith.mulf %415, %419 : vector<8x8xf32>
    %cst_118 = arith.constant dense<0.000000e+00> : vector<8x16xf32>
    %421 = tpu.matmul %420, %5, %cst_118 {dimension_numbers = #tpu.dot_dimension_numbers<[1], [0], [0], [1], [0, 0, 1, 1], [], []>} : vector<8x8xf32>, vector<8x16xf32>, vector<8x16xf32> -> vector<8x16xf32>
    %422 = tpu.concatenate %407, %421 in 1 : vector<8x16xf32>, vector<8x16xf32> -> vector<8x32xf32>
    %423 = math.tanh %422 : vector<8x32xf32>
    %424 = arith.subf %423, %386 : vector<8x32xf32>
    %425 = arith.mulf %424, %424 : vector<8x32xf32>
    %cst_119 = arith.constant dense<0.000000e+00> : vector<32xf32>
    %426 = vector.multi_reduction <add>, %425, %cst_119 [0] : vector<8x32xf32> to vector<32xf32>
    %427 = vector.shape_cast %426 : vector<32xf32> to vector<1x32xf32>
    %cst_120 = arith.constant dense<0.000000e+00> : vector<1xf32>
    %428 = vector.multi_reduction <add>, %427, %cst_120 [1] : vector<1x32xf32> to vector<1xf32>
    %429 = vector.shape_cast %428 : vector<1xf32> to vector<1x1xf32>
    %c0_i32_121 = arith.constant 0 : i32
    %430 = vector.broadcast %c0_i32_121 : i32 to vector<1x1xi32>
    %431 = arith.cmpi sgt, %390, %430 : vector<1x1xi32>
    %432 = vector.shape_cast %431 : vector<1x1xi1> to vector<1x1xi1>
    %433 = vector.broadcast %432 : vector<1x1xi1> to vector<8x32xi1>
    %434 = arith.select %433, %386, %423 : vector<8x32xi1>, vector<8x32xf32>
    %cst_122 = arith.constant 9.99999996E-13 : f32
    %435 = vector.broadcast %cst_122 : f32 to vector<1x1xf32>
    %436 = arith.cmpf olt, %429, %435 : vector<1x1xf32>
    %437 = arith.extui %436 : vector<1x1xi1> to vector<1x1xi32>
    %438 = arith.maxsi %390, %437 : vector<1x1xi32>
    %c9_i32 = arith.constant 9 : i32
    %cst_123 = arith.constant dense<0.000000e+00> : vector<8x64xf32>
    %439 = tpu.matmul %434, %2, %cst_123 {dimension_numbers = #tpu.dot_dimension_numbers<[1], [0], [0], [1], [0, 0, 1, 1], [], []>} : vector<8x32xf32>, vector<32x64xf32>, vector<8x64xf32> -> vector<8x64xf32>
    %440 = vector.broadcast %3 : vector<1x64xf32> to vector<8x64xf32>
    %441 = arith.addf %439, %440 : vector<8x64xf32>
    %442 = vector.extract_strided_slice %441 {offsets = [0, 0], sizes = [8, 16], strides = [1, 1]} : vector<8x64xf32> to vector<8x16xf32>
    %443 = vector.extract_strided_slice %441 {offsets = [0, 32], sizes = [8, 16], strides = [1, 1]} : vector<8x64xf32> to vector<8x16xf32>
    %cst_124 = arith.constant dense<0.000000e+00> : vector<8x8xf32>
    %444 = tpu.matmul %442, %443, %cst_124 {dimension_numbers = #tpu.dot_dimension_numbers<[1], [1], [0], [0], [0, 0, 1, 0], [], []>} : vector<8x16xf32>, vector<8x16xf32>, vector<8x8xf32> -> vector<8x8xf32>
    %cst_125 = arith.constant dense<0xFF800000> : vector<8xf32>
    %445 = vector.multi_reduction <maximumf>, %444, %cst_125 [1] : vector<8x8xf32> to vector<8xf32>
    %446 = vector.shape_cast %445 : vector<8xf32> to vector<8x1xf32>
    %447 = vector.broadcast %446 : vector<8x1xf32> to vector<8x8xf32>
    %448 = arith.subf %444, %447 : vector<8x8xf32>
    %449 = math.exp %448 : vector<8x8xf32>
    %cst_126 = arith.constant dense<0.000000e+00> : vector<8xf32>
    %450 = vector.multi_reduction <add>, %449, %cst_126 [1] : vector<8x8xf32> to vector<8xf32>
    %451 = vector.shape_cast %450 : vector<8xf32> to vector<8x1xf32>
    %452 = tpu.reciprocal %451 {approx = true} : vector<8x1xf32> -> vector<8x1xf32>
    %453 = vector.broadcast %452 : vector<8x1xf32> to vector<8x8xf32>
    %454 = arith.mulf %449, %453 : vector<8x8xf32>
    %cst_127 = arith.constant dense<0.000000e+00> : vector<8x16xf32>
    %455 = tpu.matmul %454, %4, %cst_127 {dimension_numbers = #tpu.dot_dimension_numbers<[1], [0], [0], [1], [0, 0, 1, 1], [], []>} : vector<8x8xf32>, vector<8x16xf32>, vector<8x16xf32> -> vector<8x16xf32>
    %456 = vector.extract_strided_slice %441 {offsets = [0, 16], sizes = [8, 16], strides = [1, 1]} : vector<8x64xf32> to vector<8x16xf32>
    %457 = vector.extract_strided_slice %441 {offsets = [0, 48], sizes = [8, 16], strides = [1, 1]} : vector<8x64xf32> to vector<8x16xf32>
    %cst_128 = arith.constant dense<0.000000e+00> : vector<8x8xf32>
    %458 = tpu.matmul %456, %457, %cst_128 {dimension_numbers = #tpu.dot_dimension_numbers<[1], [1], [0], [0], [0, 0, 1, 0], [], []>} : vector<8x16xf32>, vector<8x16xf32>, vector<8x8xf32> -> vector<8x8xf32>
    %cst_129 = arith.constant dense<0xFF800000> : vector<8xf32>
    %459 = vector.multi_reduction <maximumf>, %458, %cst_129 [1] : vector<8x8xf32> to vector<8xf32>
    %460 = vector.shape_cast %459 : vector<8xf32> to vector<8x1xf32>
    %461 = vector.broadcast %460 : vector<8x1xf32> to vector<8x8xf32>
    %462 = arith.subf %458, %461 : vector<8x8xf32>
    %463 = math.exp %462 : vector<8x8xf32>
    %cst_130 = arith.constant dense<0.000000e+00> : vector<8xf32>
    %464 = vector.multi_reduction <add>, %463, %cst_130 [1] : vector<8x8xf32> to vector<8xf32>
    %465 = vector.shape_cast %464 : vector<8xf32> to vector<8x1xf32>
    %466 = tpu.reciprocal %465 {approx = true} : vector<8x1xf32> -> vector<8x1xf32>
    %467 = vector.broadcast %466 : vector<8x1xf32> to vector<8x8xf32>
    %468 = arith.mulf %463, %467 : vector<8x8xf32>
    %cst_131 = arith.constant dense<0.000000e+00> : vector<8x16xf32>
    %469 = tpu.matmul %468, %5, %cst_131 {dimension_numbers = #tpu.dot_dimension_numbers<[1], [0], [0], [1], [0, 0, 1, 1], [], []>} : vector<8x8xf32>, vector<8x16xf32>, vector<8x16xf32> -> vector<8x16xf32>
    %470 = tpu.concatenate %455, %469 in 1 : vector<8x16xf32>, vector<8x16xf32> -> vector<8x32xf32>
    %471 = math.tanh %470 : vector<8x32xf32>
    %472 = arith.subf %471, %434 : vector<8x32xf32>
    %473 = arith.mulf %472, %472 : vector<8x32xf32>
    %cst_132 = arith.constant dense<0.000000e+00> : vector<32xf32>
    %474 = vector.multi_reduction <add>, %473, %cst_132 [0] : vector<8x32xf32> to vector<32xf32>
    %475 = vector.shape_cast %474 : vector<32xf32> to vector<1x32xf32>
    %cst_133 = arith.constant dense<0.000000e+00> : vector<1xf32>
    %476 = vector.multi_reduction <add>, %475, %cst_133 [1] : vector<1x32xf32> to vector<1xf32>
    %477 = vector.shape_cast %476 : vector<1xf32> to vector<1x1xf32>
    %c0_i32_134 = arith.constant 0 : i32
    %478 = vector.broadcast %c0_i32_134 : i32 to vector<1x1xi32>
    %479 = arith.cmpi sgt, %438, %478 : vector<1x1xi32>
    %480 = vector.shape_cast %479 : vector<1x1xi1> to vector<1x1xi1>
    %481 = vector.broadcast %480 : vector<1x1xi1> to vector<8x32xi1>
    %482 = arith.select %481, %434, %471 : vector<8x32xi1>, vector<8x32xf32>
    %cst_135 = arith.constant 9.99999996E-13 : f32
    %483 = vector.broadcast %cst_135 : f32 to vector<1x1xf32>
    %484 = arith.cmpf olt, %477, %483 : vector<1x1xf32>
    %485 = arith.extui %484 : vector<1x1xi1> to vector<1x1xi32>
    %486 = arith.maxsi %438, %485 : vector<1x1xi32>
    %c0_136 = arith.constant 0 : index
    %c0_137 = arith.constant 0 : index
    %487 = vector.load %arg4[%c0_136, %c0_137] : memref<32x32xf32, #tpu.memory_space<vmem>>, vector<32x32xf32>
    %cst_138 = arith.constant dense<0.000000e+00> : vector<8x32xf32>
    %488 = tpu.matmul %482, %487, %cst_138 {dimension_numbers = #tpu.dot_dimension_numbers<[1], [0], [0], [1], [0, 0, 1, 1], [], []>} : vector<8x32xf32>, vector<32x32xf32>, vector<8x32xf32> -> vector<8x32xf32>
    %c0_139 = arith.constant 0 : index
    %c0_140 = arith.constant 0 : index
    %489 = vector.load %arg5[%c0_139, %c0_140] : memref<1x32xf32, #tpu.memory_space<vmem>>, vector<1x32xf32>
    %490 = vector.broadcast %489 : vector<1x32xf32> to vector<8x32xf32>
    %491 = arith.addf %488, %490 : vector<8x32xf32>
    %492 = arith.addf %491, %1 : vector<8x32xf32>
    %493 = math.tanh %492 : vector<8x32xf32>
    %c0_141 = arith.constant 0 : index
    %c0_142 = arith.constant 0 : index
    %c0_143 = arith.constant 0 : index
    %494 = vector.load %arg6[%c0_141, %c0_142, %c0_143] : memref<1x8x32xf32, #tpu.memory_space<vmem>>, vector<1x8x32xf32>
    %495 = vector.shape_cast %494 : vector<1x8x32xf32> to vector<8x32xf32>
    %496 = vector.shape_cast %493 : vector<8x32xf32> to vector<1x8x32xf32>
    tpu.vector_store %arg6[%c0_141, %c0_142, %c0_143], %496 {strides = array<i32>} : memref<1x8x32xf32, #tpu.memory_space<vmem>>, vector<1x8x32xf32>,
    return
  }
  func.func @transform_0(%arg0: i32) -> (i32, i32, i32) {
    %c0_i32 = arith.constant 0 : i32
    %c0_i32_0 = arith.constant 0 : i32
    %c0_i32_1 = arith.constant 0 : i32
    return %arg0, %c0_i32, %c0_i32_0 : i32, i32, i32
  }
  func.func @transform_1(%arg0: i32) -> (i32, i32) {
    %c0_i32 = arith.constant 0 : i32
    %c0_i32_0 = arith.constant 0 : i32
    %c0_i32_1 = arith.constant 0 : i32
    return %c0_i32, %c0_i32_0 : i32, i32
  }
  func.func @transform_2(%arg0: i32) -> (i32, i32) {
    %c0_i32 = arith.constant 0 : i32
    %c0_i32_0 = arith.constant 0 : i32
    %c0_i32_1 = arith.constant 0 : i32
    return %c0_i32, %c0_i32_0 : i32, i32
  }
  func.func @transform_3(%arg0: i32) -> (i32, i32) {
    %c0_i32 = arith.constant 0 : i32
    %c0_i32_0 = arith.constant 0 : i32
    %c0_i32_1 = arith.constant 0 : i32
    return %c0_i32, %c0_i32_0 : i32, i32
  }
  func.func @transform_4(%arg0: i32) -> (i32, i32) {
    %c0_i32 = arith.constant 0 : i32
    %c0_i32_0 = arith.constant 0 : i32
    %c0_i32_1 = arith.constant 0 : i32
    return %c0_i32, %c0_i32_0 : i32, i32
  }
  func.func @transform_5(%arg0: i32) -> (i32, i32, i32) {
    %c0_i32 = arith.constant 0 : i32
    %c0_i32_0 = arith.constant 0 : i32
    %c0_i32_1 = arith.constant 0 : i32
    return %arg0, %c0_i32, %c0_i32_0 : i32, i32, i32
  }
}

</mosaic_0001>

<llo_original>
// kernel: mul.6
$region0: #{mul.6}
  %s0 = inlined_call_operand.vmem [shape: f32[2,16], index: 0, kind: input, shape index: {}]
  %s1 = inlined_call_operand.vmem [shape: f32[32], index: 1, kind: output, shape index: {}]
  $region1: #{mul.6} parent=0
    #allocation0 [shape = 'u8[4096]{0}', space=vmem, size = 0x1000, scoped, tag = 'scoped mem for output reshape']
    #allocation1 [shape = 'u8[4096]{0}', space=vmem, size = 0x1000, scoped, tag = 'scoped mem for input reshape']
    %s3 = ssub.s32 4, 1
    %v4 = vld [vmem:[%s0] sm:%s3]
    %5 = vst [vmem:[#allocation1] sm:%s3] %v4
    %v6 = vld [vmem:[#allocation1] sm:$0x1]
    %vm7 = vcmask 130048
    %8 = vst.msk [vmem:[#allocation0] sm:$0x1] %vm7, %v6
    %s9 = scalar_lea.vmem [#allocation1], 1
    %v10 = vld [vmem:[%s9] sm:$0x1]
    %11 = vrot.lane.b32.xlu0 %v10, 16
    %v12 = vpop.permute.xlu0 %11
    %vm13 = vcmask 261248
    %14 = vst.msk [vmem:[#allocation0] sm:$0x1] %vm13, %v12
    %s16 = ssub.s32 2, 1
    %v17 = vld [vmem:[#allocation0] sm:%s16]
    %s19 = ssub.s32 2, 1
    %20 = vst [vmem:[%s1] sm:%s19] %v17

// kernel: fixed_point_self_attention.1
$region0: #{fixed_point_self_attention.1}
  #allocation0 [shape = 'u32[]', space=smem, size = 0x4, offset = 0x4, fixed_abs, tag = 'smem constant byte address 0x4 - core index']
  #allocation1 [shape = 'u32[72,128]{1,0:T(1,128)}', space=vmem, size = 0x9000, scoped, tag = 'internal scratch']
  %s0 = inlined_call_operand.vmem [shape: f32[2,8,32], index: 0, kind: input, shape index: {}]
  %s1 = inlined_call_operand.vmem [shape: f32[32,64], index: 1, kind: input, shape index: {}]
  %s2 = inlined_call_operand.vmem [shape: f32[1,64], index: 2, kind: input, shape index: {}]
  %s3 = inlined_call_operand.vmem [shape: f32[32,32], index: 3, kind: input, shape index: {}]
  %s4 = inlined_call_operand.vmem [shape: f32[1,32], index: 4, kind: input, shape index: {}]
  %s5 = inlined_call_operand.hbm [shape: f32[2,8,32], index: 5, kind: output, shape index: {}]
  %s6 = sld [smem:[#allocation0]]
  $region53: #{fixed_point_self_attention.1} parent=0
    _
  %s8 = ssub.s32 1, %s6
  %s9 = scalar_select 0, %s8, %s6
  $region1: #{fixed_point_self_attention.1} parent=0
    #allocation2 [shape = 'u8[8192]{0}', space=vmem, size = 0x2000, scoped, tag = 'output window, operand 0']
    #allocation3 [shape = 's32[2]{0}', space=sflag, size = 0x8, scoped, tag = 'scoped memory for fixed_point_self_attention.1']
    %10 = vsyncpa [#allocation3], 0
    %s11 = scalar_lea.sflag [#allocation3], 1
    %12 = vsyncpa %s11, 0
    loop: start=0, step=1, limit=4
    $region2: #{fixed_point_self_attention.1} parent=1 // loop_pre_header
      _
    $region3: #{fixed_point_self_attention.1} parent=1 // loop_header
      %s14 = sphi 0, %s18
      %p15 = scmp.ge.s32.totalorder %s14, 4
      %s24 = sphi 0, %s26
      %s27 = sphi 0, %s24
      %s28 = sphi 0, %s27
      %s44 = sphi 0, %s28
      %s48 = sphi 0, %s48
      %s50 = sphi 0, %s48
      %s51 = sphi 0, %s50
      %s65 = sphi 0, %s51
      %s69 = sphi 0, %s69
      %s71 = sphi 0, %s69
      %s72 = sphi 0, %s71
      %s86 = sphi 0, %s72
      %s90 = sphi 0, %s90
      %s92 = sphi 0, %s90
      %s93 = sphi 0, %s92
      %s107 = sphi 0, %s93
      %s111 = sphi 0, %s111
      %s113 = sphi 0, %s111
      %s114 = sphi 0, %s113
      %s128 = sphi 0, %s114
      %s134 = sphi 0, %s136
      %s137 = sphi 0, %s134
      %s138 = sphi 0, %s137
      %s154 = sphi 0, %s138
    $region4: #{fixed_point_self_attention.1} parent=1 // loop_header_branch
      %17 = sbr.rel (%p15) target = $region8
    $region5: #{fixed_point_self_attention.1} parent=1 // loop_body
      %s19 = ssub.s32 %s14, 1
      %s20 = ssub.s32 %s14, 2
      %s21 = sadd.s32 %s14, 1
      %s22 = ssub.s32 %s14, %s21
      %p23 = scmp.eq.s32.totalorder %s22, 0
      %s25 = sadd.s32 %s24, 1
      %s26 = scalar_select %p23, %s24, %s25
      %p29 = pneg %p23
      %p30 = scmp.eq.s32.totalorder %s14, 1
      %p31 = por %p29, %p30
      %p32 = scmp.ne.s32.totalorder %s24, %s27
      %p33 = scmp.eq.s32.totalorder %s14, 0
      %p34 = por %p32, %p33
      %p35 = scmp.ne.s32.totalorder %s24, %s27
      %p36 = scmp.eq.s32.totalorder %s19, 1
      %p37 = por %p35, %p36
      %p38 = scmp.ne.s32.totalorder %s27, %s28
      %p39 = scmp.eq.s32.totalorder %s19, 0
      %p40 = por %p38, %p39
      %p41 = scmp.ne.s32.totalorder %s27, %s28
      %p42 = scmp.eq.s32.totalorder %s20, 1
      %p43 = por %p41, %p42
      %p45 = scmp.ne.s32.totalorder %s28, %s44
      %p46 = scmp.eq.s32.totalorder %s20, 0
      %p47 = por %p45, %p46
      %s49 = sadd.s32 %s48, 1
      %p52 = scmp.eq.s32.totalorder %s14, 1
      %p53 = scmp.ne.s32.totalorder %s48, %s50
      %p54 = scmp.eq.s32.totalorder %s14, 0
      %p55 = por %p53, %p54
      %p56 = scmp.ne.s32.totalorder %s48, %s50
      %p57 = scmp.eq.s32.totalorder %s19, 1
      %p58 = por %p56, %p57
      %p59 = scmp.ne.s32.totalorder %s50, %s51
      %p60 = scmp.eq.s32.totalorder %s19, 0
      %p61 = por %p59, %p60
      %p62 = scmp.ne.s32.totalorder %s50, %s51
      %p63 = scmp.eq.s32.totalorder %s20, 1
      %p64 = por %p62, %p63
      %p66 = scmp.ne.s32.totalorder %s51, %s65
      %p67 = scmp.eq.s32.totalorder %s20, 0
      %p68 = por %p66, %p67
      %s70 = sadd.s32 %s69, 1
      %p73 = scmp.eq.s32.totalorder %s14, 1
      %p74 = scmp.ne.s32.totalorder %s69, %s71
      %p75 = scmp.eq.s32.totalorder %s14, 0
      %p76 = por %p74, %p75
      %p77 = scmp.ne.s32.totalorder %s69, %s71
      %p78 = scmp.eq.s32.totalorder %s19, 1
      %p79 = por %p77, %p78
      %p80 = scmp.ne.s32.totalorder %s71, %s72
      %p81 = scmp.eq.s32.totalorder %s19, 0
      %p82 = por %p80, %p81
      %p83 = scmp.ne.s32.totalorder %s71, %s72
      %p84 = scmp.eq.s32.totalorder %s20, 1
      %p85 = por %p83, %p84
      %p87 = scmp.ne.s32.totalorder %s72, %s86
      %p88 = scmp.eq.s32.totalorder %s20, 0
      %p89 = por %p87, %p88
      %s91 = sadd.s32 %s90, 1
      %p94 = scmp.eq.s32.totalorder %s14, 1
      %p95 = scmp.ne.s32.totalorder %s90, %s92
      %p96 = scmp.eq.s32.totalorder %s14, 0
      %p97 = por %p95, %p96
      %p98 = scmp.ne.s32.totalorder %s90, %s92
      %p99 = scmp.eq.s32.totalorder %s19, 1
      %p100 = por %p98, %p99
      %p101 = scmp.ne.s32.totalorder %s92, %s93
      %p102 = scmp.eq.s32.totalorder %s19, 0
      %p103 = por %p101, %p102
      %p104 = scmp.ne.s32.totalorder %s92, %s93
      %p105 = scmp.eq.s32.totalorder %s20, 1
      %p106 = por %p104, %p105
      %p108 = scmp.ne.s32.totalorder %s93, %s107
      %p109 = scmp.eq.s32.totalorder %s20, 0
      %p110 = por %p108, %p109
      %s112 = sadd.s32 %s111, 1
      %p115 = scmp.eq.s32.totalorder %s14, 1
      %p116 = scmp.ne.s32.totalorder %s111, %s113
      %p117 = scmp.eq.s32.totalorder %s14, 0
      %p118 = por %p116, %p117
      %p119 = scmp.ne.s32.totalorder %s111, %s113
      %p120 = scmp.eq.s32.totalorder %s19, 1
      %p121 = por %p119, %p120
      %p122 = scmp.ne.s32.totalorder %s113, %s114
      %p123 = scmp.eq.s32.totalorder %s19, 0
      %p124 = por %p122, %p123
      %p125 = scmp.ne.s32.totalorder %s113, %s114
      %p126 = scmp.eq.s32.totalorder %s20, 1
      %p127 = por %p125, %p126
      %p129 = scmp.ne.s32.totalorder %s114, %s128
      %p130 = scmp.eq.s32.totalorder %s20, 0
      %p131 = por %p129, %p130
      %s132 = ssub.s32 %s14, %s21
      %p133 = scmp.eq.s32.totalorder %s132, 0
      %s135 = sadd.s32 %s134, 1
      %s136 = scalar_select %p133, %s134, %s135
      %p139 = pneg %p133
      %p140 = scmp.eq.s32.totalorder %s14, 1
      %p141 = por %p139, %p140
      %p142 = scmp.ne.s32.totalorder %s134, %s137
      %p143 = scmp.eq.s32.totalorder %s14, 0
      %p144 = por %p142, %p143
      %p145 = scmp.ne.s32.totalorder %s134, %s137
      %p146 = scmp.eq.s32.totalorder %s19, 1
      %p147 = por %p145, %p146
      %p148 = scmp.ne.s32.totalorder %s137, %s138
      %p149 = scmp.eq.s32.totalorder %s19, 0
      %p150 = por %p148, %p149
      %p151 = scmp.ne.s32.totalorder %s137, %s138
      %p152 = scmp.eq.s32.totalorder %s20, 1
      %p153 = por %p151, %p152
      %p155 = scmp.ne.s32.totalorder %s138, %s154
      %p156 = scmp.eq.s32.totalorder %s20, 0
      %p157 = por %p155, %p156
      %p158 = scmp.le.s32.totalorder 1, %s14
      %p159 = scmp.lt.s32.totalorder %s14, 3
      %p160 = pnand %p158, %p159
      %p161 = pneg %p160
      // Predicated region
      $region9: #{fixed_point_self_attention.1} parent=5 // pred_check
        _
      $region10: #{fixed_point_self_attention.1} parent=5 // pred_check_branch
        %163 = sbr.rel (%p160) target = $region12
      $region11: #{fixed_point_self_attention.1} parent=5 // pred_region
        %s164 = ssub.s32 %s14, 1
        // Predicated region
        $region13: #{fixed_point_self_attention.1} parent=11 // pred_check
          %p165 = pneg %p61
        $region14: #{fixed_point_self_attention.1} parent=11 // pred_check_branch
          %167 = sbr.rel (%p165) target = $region16
        $region15: #{fixed_point_self_attention.1} parent=11 // pred_region
          _
        $region16: #{fixed_point_self_attention.1} parent=11 // pred_fallthru
          _
        // Predicated region
        $region17: #{fixed_point_self_attention.1} parent=11 // pred_check
          %p168 = pneg %p82
        $region18: #{fixed_point_self_attention.1} parent=11 // pred_check_branch
          %170 = sbr.rel (%p168) target = $region20
        $region19: #{fixed_point_self_attention.1} parent=11 // pred_region
          _
        $region20: #{fixed_point_self_attention.1} parent=11 // pred_fallthru
          _
        // Predicated region
        $region21: #{fixed_point_self_attention.1} parent=11 // pred_check
          %p171 = pneg %p103
        $region22: #{fixed_point_self_attention.1} parent=11 // pred_check_branch
          %173 = sbr.rel (%p171) target = $region24
        $region23: #{fixed_point_self_attention.1} parent=11 // pred_region
          _
        $region24: #{fixed_point_self_attention.1} parent=11 // pred_fallthru
          _
        // Predicated region
        $region25: #{fixed_point_self_attention.1} parent=11 // pred_check
          %p174 = pneg %p124
        $region26: #{fixed_point_self_attention.1} parent=11 // pred_check_branch
          %176 = sbr.rel (%p174) target = $region28
        $region27: #{fixed_point_self_attention.1} parent=11 // pred_region
          _
        $region28: #{fixed_point_self_attention.1} parent=11 // pred_fallthru
          _
      $region12: #{fixed_point_self_attention.1} parent=5 // pred_fallthru
        _
      %p177 = scmp.lt.s32.totalorder %s14, 2
      // Predicated region
      $region29: #{fixed_point_self_attention.1} parent=5 // pred_check
        %p178 = pneg %p177
      $region30: #{fixed_point_self_attention.1} parent=5 // pred_check_branch
        %180 = sbr.rel (%p178) target = $region32
      $region31: #{fixed_point_self_attention.1} parent=5 // pred_region
        // Predicated region
        $region33: #{fixed_point_self_attention.1} parent=31 // pred_check
          %p181 = pneg %p34
        $region34: #{fixed_point_self_attention.1} parent=31 // pred_check_branch
          %183 = sbr.rel (%p181) target = $region36
        $region35: #{fixed_point_self_attention.1} parent=31 // pred_region
          %p184 = scmp.lt.s32.totalorder %s14, 1
          %s185 = scalar_select %p184, %s14, 1
          %s186 = smul.addr %s185, 8
          %s187 = scalar_lea.vmem %s0, %s186
        $region36: #{fixed_point_self_attention.1} parent=31 // pred_fallthru
          _
      $region32: #{fixed_point_self_attention.1} parent=5 // pred_fallthru
        _
      %p188 = scmp.le.s32.totalorder 1, %s14
      %p189 = scmp.lt.s32.totalorder %s14, 3
      %p190 = pnand %p188, %p189
      %p191 = pneg %p190
      // Predicated region
      $region37: #{fixed_point_self_attention.1} parent=5 // pred_check
        _
      $region38: #{fixed_point_self_attention.1} parent=5 // pred_check_branch
        %193 = sbr.rel (%p190) target = $region40
      $region39: #{fixed_point_self_attention.1} parent=5 // pred_region
        %s194 = ssub.s32 %s14, 1
        %p195 = scmp.lt.s32.totalorder %s19, 1
        %s196 = scalar_select %p195, %s19, 1
        %s197 = smul.addr %s196, 8
        %s198 = scalar_lea.vmem %s0, %s197
        %p199 = pneg %p40
        %p200 = pneg %p37
        %p201 = pneg %p61
        %p202 = pneg %p58
        %p203 = pneg %p82
        %p204 = pneg %p79
        %p205 = pneg %p103
        %p206 = pneg %p100
        %p207 = pneg %p124
        %p208 = pneg %p121
        %p209 = pneg %p150
        %p210 = pneg %p147
        %s211 = sand.u32 %s137, 1
        %s212 = scalar_lea.sflag [#allocation3], %s211
        %s213 = sand.u32 %s137, 1
        %s214 = smul.addr %s213, 8
        %s215 = scalar_lea.vmem [#allocation2], %s214
        %p216 = scmp.lt.s32.totalorder %s19, 1
        %s217 = scalar_select %p216, %s19, 1
        %s218 = smul.addr %s217, 8
        %s219 = scalar_lea.vmem %s0, %s218
        %v220 = vld [vmem:[%s219] sm:$0xff]
        %v221 = vld [vmem:[%s1] sm:$0xff]
        %v222 = vld [vmem:[%s1 + $0x8] sm:$0xff]
        %v223 = vld [vmem:[%s1 + $0x10] sm:$0xff]
        %v224 = vld [vmem:[%s1 + $0x18] sm:$0xff]
        %v225 = vld [vmem:[%s2] sm:$0x1]
        %v227 = vperm.slane %v225, 0
        %vm229 = vcmask 261120
        %v231 = vsel %vm229, %v220, 0
        %233 = vmatpush.msra.mxu0 0.0
        %234 = vmatpush.msra.mxu0 0.0
        %235 = vmatpush.msra.mxu0 0.0
        %236 = vmatpush.msra.mxu0 0.0
        %237 = vmatpush.msra.mxu0 0.0
        %238 = vmatpush.msra.mxu0 0.0
        %239 = vmatpush.msra.mxu0 0.0
        %240 = vmatpush.msra.mxu0 0.0
        %241 = vmatpush.msra.mxu0 0.0
        %242 = vmatpush.msra.mxu0 0.0
        %243 = vmatpush.msra.mxu0 0.0
        %244 = vmatpush.msra.mxu0 0.0
        %245 = vmatpush.msra.mxu0 %v224
        %246 = vmatpush.msra.mxu0 %v223
        %247 = vmatpush.msra.mxu0 %v222
        %248 = vmatpush.msra.mxu0 %v221
        %249 = vmatmul.f32.gmra.mxu0 %v231
        %v250 = vpop.f32.mrf.mxu0
        %v251 = vadd.f32 %v227, %v250
        %252 = vdwg.mxu0
        %254 = vrot.lane.b32.xlu0 %v251, 96
        %v255 = vpop.permute.xlu0 %254
        %vm256 = vcmask 130048
        %v257 = vsel %vm256, %v251, 0
        %v259 = vsel %vm256, %v255, 0
        %261 = vmatpush.xpose.msra.mxu0 0.0
        %262 = vmatpush.xpose.msra.mxu0 0.0
        %263 = vmatpush.xpose.msra.mxu0 0.0
        %264 = vmatpush.xpose.msra.mxu0 0.0
        %265 = vmatpush.xpose.msra.mxu0 0.0
        %266 = vmatpush.xpose.msra.mxu0 0.0
        %267 = vmatpush.xpose.msra.mxu0 0.0
        %268 = vmatpush.xpose.msra.mxu0 0.0
        %269 = vmatpush.xpose.msra.mxu0 0.0
        %270 = vmatpush.xpose.msra.mxu0 0.0
        %271 = vmatpush.xpose.msra.mxu0 0.0
        %272 = vmatpush.xpose.msra.mxu0 0.0
        %273 = vmatpush.xpose.msra.mxu0 0.0
        %274 = vmatpush.xpose.msra.mxu0 0.0
        %275 = vmatpush.xpose.msra.mxu0 0.0
        %276 = vmatpush.xpose.msra.mxu0 %v259
        %277 = vmatmul.f32.gmra.mxu0 %v257
        %v278 = vpop.f32.mrf.mxu0
        %v279 = vadd.f32 0.0, %v278
        %280 = vdwg.mxu0
        %vm281 = vcmask 64512
        %v282 = vsel %vm281, %v279, -inf
        %283 = vmax.xlane.f32.xlu0 %v282
        %v284 = vpop.xlane.xlu0 %283
        %v285 = vsub.f32 %v279, %v284
        %v286 = vmul.f32 %v285, 1.442695
        %v287 = vpow.pop %v286
        %v288 = vsel %vm281, %v287, 0.0
        %289 = vadd.xlane.f32.xlu0 %v288
        %v290 = vpop.xlane.xlu0 %289
        %v291 = vrcp.pop %v290
        %v292 = vmul.f32 %v287, %v291
        %v294 = vsel %vm281, %v292, 0
        %296 = vmatpush.msra.mxu0 0.0
        %297 = vmatpush.msra.mxu0 0.0
        %298 = vmatpush.msra.mxu0 0.0
        %299 = vmatpush.msra.mxu0 0.0
        %300 = vmatpush.msra.mxu0 0.0
        %301 = vmatpush.msra.mxu0 0.0
        %302 = vmatpush.msra.mxu0 0.0
        %303 = vmatpush.msra.mxu0 0.0
        %304 = vmatpush.msra.mxu0 0.0
        %305 = vmatpush.msra.mxu0 0.0
        %306 = vmatpush.msra.mxu0 0.0
        %307 = vmatpush.msra.mxu0 0.0
        %308 = vmatpush.msra.mxu0 0.0
        %309 = vmatpush.msra.mxu0 0.0
        %310 = vmatpush.msra.mxu0 0.0
        %311 = vmatpush.msra.mxu0 %v220
        %312 = vmatmul.f32.gmra.mxu0 %v294
        %v313 = vpop.f32.mrf.mxu0
        %v314 = vadd.f32 0.0, %v313
        %315 = vdwg.mxu0
        %316 = vrot.lane.b32.xlu0 %v251, 112
        %v317 = vpop.permute.xlu0 %316
        %318 = vrot.lane.b32.xlu0 %v251, 80
        %v319 = vpop.permute.xlu0 %318
        %v320 = vsel %vm256, %v317, 0
        %v322 = vsel %vm256, %v319, 0
        %324 = vmatpush.xpose.msra.mxu0 0.0
        %325 = vmatpush.xpose.msra.mxu0 0.0
        %326 = vmatpush.xpose.msra.mxu0 0.0
        %327 = vmatpush.xpose.msra.mxu0 0.0
        %328 = vmatpush.xpose.msra.mxu0 0.0
        %329 = vmatpush.xpose.msra.mxu0 0.0
        %330 = vmatpush.xpose.msra.mxu0 0.0
        %331 = vmatpush.xpose.msra.mxu0 0.0
        %332 = vmatpush.xpose.msra.mxu0 0.0
        %333 = vmatpush.xpose.msra.mxu0 0.0
        %334 = vmatpush.xpose.msra.mxu0 0.0
        %335 = vmatpush.xpose.msra.mxu0 0.0
        %336 = vmatpush.xpose.msra.mxu0 0.0
        %337 = vmatpush.xpose.msra.mxu0 0.0
        %338 = vmatpush.xpose.msra.mxu0 0.0
        %339 = vmatpush.xpose.msra.mxu0 %v322
        %340 = vmatmul.f32.gmra.mxu0 %v320
        %v341 = vpop.f32.mrf.mxu0
        %v342 = vadd.f32 0.0, %v341
        %343 = vdwg.mxu0
        %v344 = vsel %vm281, %v342, -inf
        %345 = vmax.xlane.f32.xlu0 %v344
        %v346 = vpop.xlane.xlu0 %345
        %v347 = vsub.f32 %v342, %v346
        %v348 = vmul.f32 %v347, 1.442695
        %v349 = vpow.pop %v348
        %v350 = vsel %vm281, %v349, 0.0
        %351 = vadd.xlane.f32.xlu0 %v350
        %v352 = vpop.xlane.xlu0 %351
        %v353 = vrcp.pop %v352
        %v354 = vmul.f32 %v349, %v353
        %355 = vrot.lane.b32.xlu0 %v220, 112
        %v356 = vpop.permute.xlu0 %355
        %v359 = vsel %vm281, %v354, 0
        %361 = vmatpush.msra.mxu0 0.0
        %362 = vmatpush.msra.mxu0 0.0
        %363 = vmatpush.msra.mxu0 0.0
        %364 = vmatpush.msra.mxu0 0.0
        %365 = vmatpush.msra.mxu0 0.0
        %366 = vmatpush.msra.mxu0 0.0
        %367 = vmatpush.msra.mxu0 0.0
        %368 = vmatpush.msra.mxu0 0.0
        %369 = vmatpush.msra.mxu0 0.0
        %370 = vmatpush.msra.mxu0 0.0
        %371 = vmatpush.msra.mxu0 0.0
        %372 = vmatpush.msra.mxu0 0.0
        %373 = vmatpush.msra.mxu0 0.0
        %374 = vmatpush.msra.mxu0 0.0
        %375 = vmatpush.msra.mxu0 0.0
        %376 = vmatpush.msra.mxu0 %v356
        %377 = vmatmul.f32.gmra.mxu0 %v359
        %v378 = vpop.f32.mrf.mxu0
        %v379 = vadd.f32 0.0, %v378
        %380 = vdwg.mxu0
        %382 = vrot.lane.b32.xlu0 %v379, 16
        %v383 = vpop.permute.xlu0 %382
        %v385 = vsel %vm256, %v314, %v383
        %v386 = vtanh.pop %v385
        %v387 = vsub.f32 %v386, %v220
        %v388 = vmul.f32 %v387, %v387
        %v389 = vsel %vm229, %v388, 0.0
        %v390 = vrot.slane %v389, 4
        %v391 = vadd.f32 %v389, %v390
        %v392 = vrot.slane %v391, 2
        %v393 = vadd.f32 %v391, %v392
        %v394 = vrot.slane %v393, 1
        %v395 = vadd.f32 %v393, %v394
        %v396 = vsel %vm229, %v395, 0.0
        %397 = vadd.xlane.f32.xlu0 %v396
        %v398 = vpop.xlane.xlu0 %397
        %vm399 = vcmp.lt.f32.partialorder %v398, 1e-12
        %v400 = vsel %vm399, 1, 0
        %v401 = vsel %vm399, %v400, 0
        %v403 = vsel %vm229, %v386, 0
        %405 = vmatpush.msra.mxu0 0.0
        %406 = vmatpush.msra.mxu0 0.0
        %407 = vmatpush.msra.mxu0 0.0
        %408 = vmatpush.msra.mxu0 0.0
        %409 = vmatpush.msra.mxu0 0.0
        %410 = vmatpush.msra.mxu0 0.0
        %411 = vmatpush.msra.mxu0 0.0
        %412 = vmatpush.msra.mxu0 0.0
        %413 = vmatpush.msra.mxu0 0.0
        %414 = vmatpush.msra.mxu0 0.0
        %415 = vmatpush.msra.mxu0 0.0
        %416 = vmatpush.msra.mxu0 0.0
        %417 = vmatpush.msra.mxu0 %v224
        %418 = vmatpush.msra.mxu0 %v223
        %419 = vmatpush.msra.mxu0 %v222
        %420 = vmatpush.msra.mxu0 %v221
        %421 = vmatmul.f32.gmra.mxu0 %v403
        %v422 = vpop.f32.mrf.mxu0
        %v423 = vadd.f32 %v227, %v422
        %424 = vdwg.mxu0
        %426 = vrot.lane.b32.xlu0 %v423, 96
        %v427 = vpop.permute.xlu0 %426
        %v428 = vsel %vm256, %v423, 0
        %v430 = vsel %vm256, %v427, 0
        %432 = vmatpush.xpose.msra.mxu0 0.0
        %433 = vmatpush.xpose.msra.mxu0 0.0
        %434 = vmatpush.xpose.msra.mxu0 0.0
        %435 = vmatpush.xpose.msra.mxu0 0.0
        %436 = vmatpush.xpose.msra.mxu0 0.0
        %437 = vmatpush.xpose.msra.mxu0 0.0
        %438 = vmatpush.xpose.msra.mxu0 0.0
        %439 = vmatpush.xpose.msra.mxu0 0.0
        %440 = vmatpush.xpose.msra.mxu0 0.0
        %441 = vmatpush.xpose.msra.mxu0 0.0
        %442 = vmatpush.xpose.msra.mxu0 0.0
        %443 = vmatpush.xpose.msra.mxu0 0.0
        %444 = vmatpush.xpose.msra.mxu0 0.0
        %445 = vmatpush.xpose.msra.mxu0 0.0
        %446 = vmatpush.xpose.msra.mxu0 0.0
        %447 = vmatpush.xpose.msra.mxu0 %v430
        %448 = vmatmul.f32.gmra.mxu0 %v428
        %v449 = vpop.f32.mrf.mxu0
        %v450 = vadd.f32 0.0, %v449
        %451 = vdwg.mxu0
        %v452 = vsel %vm281, %v450, -inf
        %453 = vmax.xlane.f32.xlu0 %v452
        %v454 = vpop.xlane.xlu0 %453
        %v455 = vsub.f32 %v450, %v454
        %v456 = vmul.f32 %v455, 1.442695
        %v457 = vpow.pop %v456
        %v458 = vsel %vm281, %v457, 0.0
        %459 = vadd.xlane.f32.xlu0 %v458
        %v460 = vpop.xlane.xlu0 %459
        %v461 = vrcp.pop %v460
        %v462 = vmul.f32 %v457, %v461
        %v464 = vsel %vm281, %v462, 0
        %466 = vmatpush.msra.mxu0 0.0
        %467 = vmatpush.msra.mxu0 0.0
        %468 = vmatpush.msra.mxu0 0.0
        %469 = vmatpush.msra.mxu0 0.0
        %470 = vmatpush.msra.mxu0 0.0
        %471 = vmatpush.msra.mxu0 0.0
        %472 = vmatpush.msra.mxu0 0.0
        %473 = vmatpush.msra.mxu0 0.0
        %474 = vmatpush.msra.mxu0 0.0
        %475 = vmatpush.msra.mxu0 0.0
        %476 = vmatpush.msra.mxu0 0.0
        %477 = vmatpush.msra.mxu0 0.0
        %478 = vmatpush.msra.mxu0 0.0
        %479 = vmatpush.msra.mxu0 0.0
        %480 = vmatpush.msra.mxu0 0.0
        %481 = vmatpush.msra.mxu0 %v220
        %482 = vmatmul.f32.gmra.mxu0 %v464
        %v483 = vpop.f32.mrf.mxu0
        %v484 = vadd.f32 0.0, %v483
        %485 = vdwg.mxu0
        %486 = vrot.lane.b32.xlu0 %v423, 112
        %v487 = vpop.permute.xlu0 %486
        %488 = vrot.lane.b32.xlu0 %v423, 80
        %v489 = vpop.permute.xlu0 %488
        %v490 = vsel %vm256, %v487, 0
        %v492 = vsel %vm256, %v489, 0
        %494 = vmatpush.xpose.msra.mxu0 0.0
        %495 = vmatpush.xpose.msra.mxu0 0.0
        %496 = vmatpush.xpose.msra.mxu0 0.0
        %497 = vmatpush.xpose.msra.mxu0 0.0
        %498 = vmatpush.xpose.msra.mxu0 0.0
        %499 = vmatpush.xpose.msra.mxu0 0.0
        %500 = vmatpush.xpose.msra.mxu0 0.0
        %501 = vmatpush.xpose.msra.mxu0 0.0
        %502 = vmatpush.xpose.msra.mxu0 0.0
        %503 = vmatpush.xpose.msra.mxu0 0.0
        %504 = vmatpush.xpose.msra.mxu0 0.0
        %505 = vmatpush.xpose.msra.mxu0 0.0
        %506 = vmatpush.xpose.msra.mxu0 0.0
        %507 = vmatpush.xpose.msra.mxu0 0.0
        %508 = vmatpush.xpose.msra.mxu0 0.0
        %509 = vmatpush.xpose.msra.mxu0 %v492
        %510 = vmatmul.f32.gmra.mxu0 %v490
        %v511 = vpop.f32.mrf.mxu0
        %v512 = vadd.f32 0.0, %v511
        %513 = vdwg.mxu0
        %v514 = vsel %vm281, %v512, -inf
        %515 = vmax.xlane.f32.xlu0 %v514
        %v516 = vpop.xlane.xlu0 %515
        %v517 = vsub.f32 %v512, %v516
        %v518 = vmul.f32 %v517, 1.442695
        %v519 = vpow.pop %v518
        %v520 = vsel %vm281, %v519, 0.0
        %521 = vadd.xlane.f32.xlu0 %v520
        %v522 = vpop.xlane.xlu0 %521
        %v523 = vrcp.pop %v522
        %v524 = vmul.f32 %v519, %v523
        %v526 = vsel %vm281, %v524, 0
        %528 = vmatpush.msra.mxu0 0.0
        %529 = vmatpush.msra.mxu0 0.0
        %530 = vmatpush.msra.mxu0 0.0
        %531 = vmatpush.msra.mxu0 0.0
        %532 = vmatpush.msra.mxu0 0.0
        %533 = vmatpush.msra.mxu0 0.0
        %534 = vmatpush.msra.mxu0 0.0
        %535 = vmatpush.msra.mxu0 0.0
        %536 = vmatpush.msra.mxu0 0.0
        %537 = vmatpush.msra.mxu0 0.0
        %538 = vmatpush.msra.mxu0 0.0
        %539 = vmatpush.msra.mxu0 0.0
        %540 = vmatpush.msra.mxu0 0.0
        %541 = vmatpush.msra.mxu0 0.0
        %542 = vmatpush.msra.mxu0 0.0
        %543 = vmatpush.msra.mxu0 %v356
        %544 = vmatmul.f32.gmra.mxu0 %v526
        %v545 = vpop.f32.mrf.mxu0
        %v546 = vadd.f32 0.0, %v545
        %547 = vdwg.mxu0
        %549 = vrot.lane.b32.xlu0 %v546, 16
        %v550 = vpop.permute.xlu0 %549
        %v552 = vsel %vm256, %v484, %v550
        %v553 = vtanh.pop %v552
        %v554 = vsub.f32 %v553, %v386
        %v555 = vmul.f32 %v554, %v554
        %v556 = vsel %vm229, %v555, 0.0
        %v557 = vrot.slane %v556, 4
        %v558 = vadd.f32 %v556, %v557
        %v559 = vrot.slane %v558, 2
        %v560 = vadd.f32 %v558, %v559
        %v561 = vrot.slane %v560, 1
        %v562 = vadd.f32 %v560, %v561
        %v563 = vsel %vm229, %v562, 0.0
        %564 = vadd.xlane.f32.xlu0 %v563
        %v565 = vpop.xlane.xlu0 %564
        %vm566 = vcmp.gt.s32.totalorder %v401, 0
        %v567 = vsel %vm566, 1, 0
        %vm568 = vcmp.eq.s32.totalorder %v567, 1
        %v569 = vsel %vm568, %v386, %v553
        %vm570 = vcmp.lt.f32.partialorder %v565, 1e-12
        %v571 = vsel %vm570, 1, 0
        %vm572 = vcmp.gt.s32.totalorder %v401, %v571
        %v573 = vsel %vm572, %v401, %v571
        %v575 = vsel %vm229, %v569, 0
        %577 = vmatpush.msra.mxu0 0.0
        %578 = vmatpush.msra.mxu0 0.0
        %579 = vmatpush.msra.mxu0 0.0
        %580 = vmatpush.msra.mxu0 0.0
        %581 = vmatpush.msra.mxu0 0.0
        %582 = vmatpush.msra.mxu0 0.0
        %583 = vmatpush.msra.mxu0 0.0
        %584 = vmatpush.msra.mxu0 0.0
        %585 = vmatpush.msra.mxu0 0.0
        %586 = vmatpush.msra.mxu0 0.0
        %587 = vmatpush.msra.mxu0 0.0
        %588 = vmatpush.msra.mxu0 0.0
        %589 = vmatpush.msra.mxu0 %v224
        %590 = vmatpush.msra.mxu0 %v223
        %591 = vmatpush.msra.mxu0 %v222
        %592 = vmatpush.msra.mxu0 %v221
        %593 = vmatmul.f32.gmra.mxu0 %v575
        %v594 = vpop.f32.mrf.mxu0
        %v595 = vadd.f32 %v227, %v594
        %596 = vdwg.mxu0
        %598 = vrot.lane.b32.xlu0 %v595, 96
        %v599 = vpop.permute.xlu0 %598
        %v600 = vsel %vm256, %v595, 0
        %v602 = vsel %vm256, %v599, 0
        %604 = vmatpush.xpose.msra.mxu0 0.0
        %605 = vmatpush.xpose.msra.mxu0 0.0
        %606 = vmatpush.xpose.msra.mxu0 0.0
        %607 = vmatpush.xpose.msra.mxu0 0.0
        %608 = vmatpush.xpose.msra.mxu0 0.0
        %609 = vmatpush.xpose.msra.mxu0 0.0
        %610 = vmatpush.xpose.msra.mxu0 0.0
        %611 = vmatpush.xpose.msra.mxu0 0.0
        %612 = vmatpush.xpose.msra.mxu0 0.0
        %613 = vmatpush.xpose.msra.mxu0 0.0
        %614 = vmatpush.xpose.msra.mxu0 0.0
        %615 = vmatpush.xpose.msra.mxu0 0.0
        %616 = vmatpush.xpose.msra.mxu0 0.0
        %617 = vmatpush.xpose.msra.mxu0 0.0
        %618 = vmatpush.xpose.msra.mxu0 0.0
        %619 = vmatpush.xpose.msra.mxu0 %v602
        %620 = vmatmul.f32.gmra.mxu0 %v600
        %v621 = vpop.f32.mrf.mxu0
        %v622 = vadd.f32 0.0, %v621
        %623 = vdwg.mxu0
        %v624 = vsel %vm281, %v622, -inf
        %625 = vmax.xlane.f32.xlu0 %v624
        %v626 = vpop.xlane.xlu0 %625
        %v627 = vsub.f32 %v622, %v626
        %v628 = vmul.f32 %v627, 1.442695
        %v629 = vpow.pop %v628
        %v630 = vsel %vm281, %v629, 0.0
        %631 = vadd.xlane.f32.xlu0 %v630
        %v632 = vpop.xlane.xlu0 %631
        %v633 = vrcp.pop %v632
        %v634 = vmul.f32 %v629, %v633
        %v636 = vsel %vm281, %v634, 0
        %638 = vmatpush.msra.mxu0 0.0
        %639 = vmatpush.msra.mxu0 0.0
        %640 = vmatpush.msra.mxu0 0.0
        %641 = vmatpush.msra.mxu0 0.0
        %642 = vmatpush.msra.mxu0 0.0
        %643 = vmatpush.msra.mxu0 0.0
        %644 = vmatpush.msra.mxu0 0.0
        %645 = vmatpush.msra.mxu0 0.0
        %646 = vmatpush.msra.mxu0 0.0
        %647 = vmatpush.msra.mxu0 0.0
        %648 = vmatpush.msra.mxu0 0.0
        %649 = vmatpush.msra.mxu0 0.0
        %650 = vmatpush.msra.mxu0 0.0
        %651 = vmatpush.msra.mxu0 0.0
        %652 = vmatpush.msra.mxu0 0.0
        %653 = vmatpush.msra.mxu0 %v220
        %654 = vmatmul.f32.gmra.mxu0 %v636
        %v655 = vpop.f32.mrf.mxu0
        %v656 = vadd.f32 0.0, %v655
        %657 = vdwg.mxu0
        %658 = vrot.lane.b32.xlu0 %v595, 112
        %v659 = vpop.permute.xlu0 %658
        %660 = vrot.lane.b32.xlu0 %v595, 80
        %v661 = vpop.permute.xlu0 %660
        %v662 = vsel %vm256, %v659, 0
        %v664 = vsel %vm256, %v661, 0
        %666 = vmatpush.xpose.msra.mxu0 0.0
        %667 = vmatpush.xpose.msra.mxu0 0.0
        %668 = vmatpush.xpose.msra.mxu0 0.0
        %669 = vmatpush.xpose.msra.mxu0 0.0
        %670 = vmatpush.xpose.msra.mxu0 0.0
        %671 = vmatpush.xpose.msra.mxu0 0.0
        %672 = vmatpush.xpose.msra.mxu0 0.0
        %673 = vmatpush.xpose.msra.mxu0 0.0
        %674 = vmatpush.xpose.msra.mxu0 0.0
        %675 = vmatpush.xpose.msra.mxu0 0.0
        %676 = vmatpush.xpose.msra.mxu0 0.0
        %677 = vmatpush.xpose.msra.mxu0 0.0
        %678 = vmatpush.xpose.msra.mxu0 0.0
        %679 = vmatpush.xpose.msra.mxu0 0.0
        %680 = vmatpush.xpose.msra.mxu0 0.0
        %681 = vmatpush.xpose.msra.mxu0 %v664
        %682 = vmatmul.f32.gmra.mxu0 %v662
        %v683 = vpop.f32.mrf.mxu0
        %v684 = vadd.f32 0.0, %v683
        %685 = vdwg.mxu0
        %v686 = vsel %vm281, %v684, -inf
        %687 = vmax.xlane.f32.xlu0 %v686
        %v688 = vpop.xlane.xlu0 %687
        %v689 = vsub.f32 %v684, %v688
        %v690 = vmul.f32 %v689, 1.442695
        %v691 = vpow.pop %v690
        %v692 = vsel %vm281, %v691, 0.0
        %693 = vadd.xlane.f32.xlu0 %v692
        %v694 = vpop.xlane.xlu0 %693
        %v695 = vrcp.pop %v694
        %v696 = vmul.f32 %v691, %v695
        %v698 = vsel %vm281, %v696, 0
        %700 = vmatpush.msra.mxu0 0.0
        %701 = vmatpush.msra.mxu0 0.0
        %702 = vmatpush.msra.mxu0 0.0
        %703 = vmatpush.msra.mxu0 0.0
        %704 = vmatpush.msra.mxu0 0.0
        %705 = vmatpush.msra.mxu0 0.0
        %706 = vmatpush.msra.mxu0 0.0
        %707 = vmatpush.msra.mxu0 0.0
        %708 = vmatpush.msra.mxu0 0.0
        %709 = vmatpush.msra.mxu0 0.0
        %710 = vmatpush.msra.mxu0 0.0
        %711 = vmatpush.msra.mxu0 0.0
        %712 = vmatpush.msra.mxu0 0.0
        %713 = vmatpush.msra.mxu0 0.0
        %714 = vmatpush.msra.mxu0 0.0
        %715 = vmatpush.msra.mxu0 %v356
        %716 = vmatmul.f32.gmra.mxu0 %v698
        %v717 = vpop.f32.mrf.mxu0
        %v718 = vadd.f32 0.0, %v717
        %719 = vdwg.mxu0
        %721 = vrot.lane.b32.xlu0 %v718, 16
        %v722 = vpop.permute.xlu0 %721
        %v724 = vsel %vm256, %v656, %v722
        %v725 = vtanh.pop %v724
        %v726 = vsub.f32 %v725, %v569
        %v727 = vmul.f32 %v726, %v726
        %v728 = vsel %vm229, %v727, 0.0
        %v729 = vrot.slane %v728, 4
        %v730 = vadd.f32 %v728, %v729
        %v731 = vrot.slane %v730, 2
        %v732 = vadd.f32 %v730, %v731
        %v733 = vrot.slane %v732, 1
        %v734 = vadd.f32 %v732, %v733
        %v735 = vsel %vm229, %v734, 0.0
        %736 = vadd.xlane.f32.xlu0 %v735
        %v737 = vpop.xlane.xlu0 %736
        %vm738 = vcmp.gt.s32.totalorder %v573, 0
        %v739 = vsel %vm738, 1, 0
        %vm740 = vcmp.eq.s32.totalorder %v739, 1
        %v741 = vsel %vm740, %v569, %v725
        %vm742 = vcmp.lt.f32.partialorder %v737, 1e-12
        %v743 = vsel %vm742, 1, 0
        %vm744 = vcmp.gt.s32.totalorder %v573, %v743
        %v745 = vsel %vm744, %v573, %v743
        %v747 = vsel %vm229, %v741, 0
        %749 = vmatpush.msra.mxu0 0.0
        %750 = vmatpush.msra.mxu0 0.0
        %751 = vmatpush.msra.mxu0 0.0
        %752 = vmatpush.msra.mxu0 0.0
        %753 = vmatpush.msra.mxu0 0.0
        %754 = vmatpush.msra.mxu0 0.0
        %755 = vmatpush.msra.mxu0 0.0
        %756 = vmatpush.msra.mxu0 0.0
        %757 = vmatpush.msra.mxu0 0.0
        %758 = vmatpush.msra.mxu0 0.0
        %759 = vmatpush.msra.mxu0 0.0
        %760 = vmatpush.msra.mxu0 0.0
        %761 = vmatpush.msra.mxu0 %v224
        %762 = vmatpush.msra.mxu0 %v223
        %763 = vmatpush.msra.mxu0 %v222
        %764 = vmatpush.msra.mxu0 %v221
        %765 = vmatmul.f32.gmra.mxu0 %v747
        %v766 = vpop.f32.mrf.mxu0
        %v767 = vadd.f32 %v227, %v766
        %768 = vdwg.mxu0
        %770 = vrot.lane.b32.xlu0 %v767, 96
        %v771 = vpop.permute.xlu0 %770
        %v772 = vsel %vm256, %v767, 0
        %v774 = vsel %vm256, %v771, 0
        %776 = vmatpush.xpose.msra.mxu0 0.0
        %777 = vmatpush.xpose.msra.mxu0 0.0
        %778 = vmatpush.xpose.msra.mxu0 0.0
        %779 = vmatpush.xpose.msra.mxu0 0.0
        %780 = vmatpush.xpose.msra.mxu0 0.0
        %781 = vmatpush.xpose.msra.mxu0 0.0
        %782 = vmatpush.xpose.msra.mxu0 0.0
        %783 = vmatpush.xpose.msra.mxu0 0.0
        %784 = vmatpush.xpose.msra.mxu0 0.0
        %785 = vmatpush.xpose.msra.mxu0 0.0
        %786 = vmatpush.xpose.msra.mxu0 0.0
        %787 = vmatpush.xpose.msra.mxu0 0.0
        %788 = vmatpush.xpose.msra.mxu0 0.0
        %789 = vmatpush.xpose.msra.mxu0 0.0
        %790 = vmatpush.xpose.msra.mxu0 0.0
        %791 = vmatpush.xpose.msra.mxu0 %v774
        %792 = vmatmul.f32.gmra.mxu0 %v772
        %v793 = vpop.f32.mrf.mxu0
        %v794 = vadd.f32 0.0, %v793
        %795 = vdwg.mxu0
        %v796 = vsel %vm281, %v794, -inf
        %797 = vmax.xlane.f32.xlu0 %v796
        %v798 = vpop.xlane.xlu0 %797
        %v799 = vsub.f32 %v794, %v798
        %v800 = vmul.f32 %v799, 1.442695
        %v801 = vpow.pop %v800
        %v802 = vsel %vm281, %v801, 0.0
        %803 = vadd.xlane.f32.xlu0 %v802
        %v804 = vpop.xlane.xlu0 %803
        %v805 = vrcp.pop %v804
        %v806 = vmul.f32 %v801, %v805
        %v808 = vsel %vm281, %v806, 0
        %810 = vmatpush.msra.mxu0 0.0
        %811 = vmatpush.msra.mxu0 0.0
        %812 = vmatpush.msra.mxu0 0.0
        %813 = vmatpush.msra.mxu0 0.0
        %814 = vmatpush.msra.mxu0 0.0
        %815 = vmatpush.msra.mxu0 0.0
        %816 = vmatpush.msra.mxu0 0.0
        %817 = vmatpush.msra.mxu0 0.0
        %818 = vmatpush.msra.mxu0 0.0
        %819 = vmatpush.msra.mxu0 0.0
        %820 = vmatpush.msra.mxu0 0.0
        %821 = vmatpush.msra.mxu0 0.0
        %822 = vmatpush.msra.mxu0 0.0
        %823 = vmatpush.msra.mxu0 0.0
        %824 = vmatpush.msra.mxu0 0.0
        %825 = vmatpush.msra.mxu0 %v220
        %826 = vmatmul.f32.gmra.mxu0 %v808
        %v827 = vpop.f32.mrf.mxu0
        %v828 = vadd.f32 0.0, %v827
        %829 = vdwg.mxu0
        %830 = vrot.lane.b32.xlu0 %v767, 112
        %v831 = vpop.permute.xlu0 %830
        %832 = vrot.lane.b32.xlu0 %v767, 80
        %v833 = vpop.permute.xlu0 %832
        %v834 = vsel %vm256, %v831, 0
        %v836 = vsel %vm256, %v833, 0
        %838 = vmatpush.xpose.msra.mxu0 0.0
        %839 = vmatpush.xpose.msra.mxu0 0.0
        %840 = vmatpush.xpose.msra.mxu0 0.0
        %841 = vmatpush.xpose.msra.mxu0 0.0
        %842 = vmatpush.xpose.msra.mxu0 0.0
        %843 = vmatpush.xpose.msra.mxu0 0.0
        %844 = vmatpush.xpose.msra.mxu0 0.0
        %845 = vmatpush.xpose.msra.mxu0 0.0
        %846 = vmatpush.xpose.msra.mxu0 0.0
        %847 = vmatpush.xpose.msra.mxu0 0.0
        %848 = vmatpush.xpose.msra.mxu0 0.0
        %849 = vmatpush.xpose.msra.mxu0 0.0
        %850 = vmatpush.xpose.msra.mxu0 0.0
        %851 = vmatpush.xpose.msra.mxu0 0.0
        %852 = vmatpush.xpose.msra.mxu0 0.0
        %853 = vmatpush.xpose.msra.mxu0 %v836
        %854 = vmatmul.f32.gmra.mxu0 %v834
        %v855 = vpop.f32.mrf.mxu0
        %v856 = vadd.f32 0.0, %v855
        %857 = vdwg.mxu0
        %v858 = vsel %vm281, %v856, -inf
        %859 = vmax.xlane.f32.xlu0 %v858
        %v860 = vpop.xlane.xlu0 %859
        %v861 = vsub.f32 %v856, %v860
        %v862 = vmul.f32 %v861, 1.442695
        %v863 = vpow.pop %v862
        %v864 = vsel %vm281, %v863, 0.0
        %865 = vadd.xlane.f32.xlu0 %v864
        %v866 = vpop.xlane.xlu0 %865
        %v867 = vrcp.pop %v866
        %v868 = vmul.f32 %v863, %v867
        %v870 = vsel %vm281, %v868, 0
        %872 = vmatpush.msra.mxu0 0.0
        %873 = vmatpush.msra.mxu0 0.0
        %874 = vmatpush.msra.mxu0 0.0
        %875 = vmatpush.msra.mxu0 0.0
        %876 = vmatpush.msra.mxu0 0.0
        %877 = vmatpush.msra.mxu0 0.0
        %878 = vmatpush.msra.mxu0 0.0
        %879 = vmatpush.msra.mxu0 0.0
        %880 = vmatpush.msra.mxu0 0.0
        %881 = vmatpush.msra.mxu0 0.0
        %882 = vmatpush.msra.mxu0 0.0
        %883 = vmatpush.msra.mxu0 0.0
        %884 = vmatpush.msra.mxu0 0.0
        %885 = vmatpush.msra.mxu0 0.0
        %886 = vmatpush.msra.mxu0 0.0
        %887 = vmatpush.msra.mxu0 %v356
        %888 = vmatmul.f32.gmra.mxu0 %v870
        %v889 = vpop.f32.mrf.mxu0
        %v890 = vadd.f32 0.0, %v889
        %891 = vdwg.mxu0
        %893 = vrot.lane.b32.xlu0 %v890, 16
        %v894 = vpop.permute.xlu0 %893
        %v896 = vsel %vm256, %v828, %v894
        %v897 = vtanh.pop %v896
        %v898 = vsub.f32 %v897, %v741
        %v899 = vmul.f32 %v898, %v898
        %v900 = vsel %vm229, %v899, 0.0
        %v901 = vrot.slane %v900, 4
        %v902 = vadd.f32 %v900, %v901
        %v903 = vrot.slane %v902, 2
        %v904 = vadd.f32 %v902, %v903
        %v905 = vrot.slane %v904, 1
        %v906 = vadd.f32 %v904, %v905
        %v907 = vsel %vm229, %v906, 0.0
        %908 = vadd.xlane.f32.xlu0 %v907
        %v909 = vpop.xlane.xlu0 %908
        %vm910 = vcmp.gt.s32.totalorder %v745, 0
        %v911 = vsel %vm910, 1, 0
        %vm912 = vcmp.eq.s32.totalorder %v911, 1
        %v913 = vsel %vm912, %v741, %v897
        %vm914 = vcmp.lt.f32.partialorder %v909, 1e-12
        %v915 = vsel %vm914, 1, 0
        %vm916 = vcmp.gt.s32.totalorder %v745, %v915
        %v917 = vsel %vm916, %v745, %v915
        %v919 = vsel %vm229, %v913, 0
        %921 = vmatpush.msra.mxu0 0.0
        %922 = vmatpush.msra.mxu0 0.0
        %923 = vmatpush.msra.mxu0 0.0
        %924 = vmatpush.msra.mxu0 0.0
        %925 = vmatpush.msra.mxu0 0.0
        %926 = vmatpush.msra.mxu0 0.0
        %927 = vmatpush.msra.mxu0 0.0
        %928 = vmatpush.msra.mxu0 0.0
        %929 = vmatpush.msra.mxu0 0.0
        %930 = vmatpush.msra.mxu0 0.0
        %931 = vmatpush.msra.mxu0 0.0
        %932 = vmatpush.msra.mxu0 0.0
        %933 = vmatpush.msra.mxu0 %v224
        %934 = vmatpush.msra.mxu0 %v223
        %935 = vmatpush.msra.mxu0 %v222
        %936 = vmatpush.msra.mxu0 %v221
        %937 = vmatmul.f32.gmra.mxu0 %v919
        %v938 = vpop.f32.mrf.mxu0
        %v939 = vadd.f32 %v227, %v938
        %940 = vdwg.mxu0
        %942 = vrot.lane.b32.xlu0 %v939, 96
        %v943 = vpop.permute.xlu0 %942
        %v944 = vsel %vm256, %v939, 0
        %v946 = vsel %vm256, %v943, 0
        %948 = vmatpush.xpose.msra.mxu0 0.0
        %949 = vmatpush.xpose.msra.mxu0 0.0
        %950 = vmatpush.xpose.msra.mxu0 0.0
        %951 = vmatpush.xpose.msra.mxu0 0.0
        %952 = vmatpush.xpose.msra.mxu0 0.0
        %953 = vmatpush.xpose.msra.mxu0 0.0
        %954 = vmatpush.xpose.msra.mxu0 0.0
        %955 = vmatpush.xpose.msra.mxu0 0.0
        %956 = vmatpush.xpose.msra.mxu0 0.0
        %957 = vmatpush.xpose.msra.mxu0 0.0
        %958 = vmatpush.xpose.msra.mxu0 0.0
        %959 = vmatpush.xpose.msra.mxu0 0.0
        %960 = vmatpush.xpose.msra.mxu0 0.0
        %961 = vmatpush.xpose.msra.mxu0 0.0
        %962 = vmatpush.xpose.msra.mxu0 0.0
        %963 = vmatpush.xpose.msra.mxu0 %v946
        %964 = vmatmul.f32.gmra.mxu0 %v944
        %v965 = vpop.f32.mrf.mxu0
        %v966 = vadd.f32 0.0, %v965
        %967 = vdwg.mxu0
        %v968 = vsel %vm281, %v966, -inf
        %969 = vmax.xlane.f32.xlu0 %v968
        %v970 = vpop.xlane.xlu0 %969
        %v971 = vsub.f32 %v966, %v970
        %v972 = vmul.f32 %v971, 1.442695
        %v973 = vpow.pop %v972
        %v974 = vsel %vm281, %v973, 0.0
        %975 = vadd.xlane.f32.xlu0 %v974
        %v976 = vpop.xlane.xlu0 %975
        %v977 = vrcp.pop %v976
        %v978 = vmul.f32 %v973, %v977
        %v980 = vsel %vm281, %v978, 0
        %982 = vmatpush.msra.mxu0 0.0
        %983 = vmatpush.msra.mxu0 0.0
        %984 = vmatpush.msra.mxu0 0.0
        %985 = vmatpush.msra.mxu0 0.0
        %986 = vmatpush.msra.mxu0 0.0
        %987 = vmatpush.msra.mxu0 0.0
        %988 = vmatpush.msra.mxu0 0.0
        %989 = vmatpush.msra.mxu0 0.0
        %990 = vmatpush.msra.mxu0 0.0
        %991 = vmatpush.msra.mxu0 0.0
        %992 = vmatpush.msra.mxu0 0.0
        %993 = vmatpush.msra.mxu0 0.0
        %994 = vmatpush.msra.mxu0 0.0
        %995 = vmatpush.msra.mxu0 0.0
        %996 = vmatpush.msra.mxu0 0.0
        %997 = vmatpush.msra.mxu0 %v220
        %998 = vmatmul.f32.gmra.mxu0 %v980
        %v999 = vpop.f32.mrf.mxu0
        %v1000 = vadd.f32 0.0, %v999
        %1001 = vdwg.mxu0
        %1002 = vrot.lane.b32.xlu0 %v939, 112
        %v1003 = vpop.permute.xlu0 %1002
        %1004 = vrot.lane.b32.xlu0 %v939, 80
        %v1005 = vpop.permute.xlu0 %1004
        %v1006 = vsel %vm256, %v1003, 0
        %v1008 = vsel %vm256, %v1005, 0
        %1010 = vmatpush.xpose.msra.mxu0 0.0
        %1011 = vmatpush.xpose.msra.mxu0 0.0
        %1012 = vmatpush.xpose.msra.mxu0 0.0
        %1013 = vmatpush.xpose.msra.mxu0 0.0
        %1014 = vmatpush.xpose.msra.mxu0 0.0
        %1015 = vmatpush.xpose.msra.mxu0 0.0
        %1016 = vmatpush.xpose.msra.mxu0 0.0
        %1017 = vmatpush.xpose.msra.mxu0 0.0
        %1018 = vmatpush.xpose.msra.mxu0 0.0
        %1019 = vmatpush.xpose.msra.mxu0 0.0
        %1020 = vmatpush.xpose.msra.mxu0 0.0
        %1021 = vmatpush.xpose.msra.mxu0 0.0
        %1022 = vmatpush.xpose.msra.mxu0 0.0
        %1023 = vmatpush.xpose.msra.mxu0 0.0
        %1024 = vmatpush.xpose.msra.mxu0 0.0
        %1025 = vmatpush.xpose.msra.mxu0 %v1008
        %1026 = vmatmul.f32.gmra.mxu0 %v1006
        %v1027 = vpop.f32.mrf.mxu0
        %v1028 = vadd.f32 0.0, %v1027
        %1029 = vdwg.mxu0
        %v1030 = vsel %vm281, %v1028, -inf
        %1031 = vmax.xlane.f32.xlu0 %v1030
        %v1032 = vpop.xlane.xlu0 %1031
        %v1033 = vsub.f32 %v1028, %v1032
        %v1034 = vmul.f32 %v1033, 1.442695
        %v1035 = vpow.pop %v1034
        %v1036 = vsel %vm281, %v1035, 0.0
        %1037 = vadd.xlane.f32.xlu0 %v1036
        %v1038 = vpop.xlane.xlu0 %1037
        %v1039 = vrcp.pop %v1038
        %v1040 = vmul.f32 %v1035, %v1039
        %v1042 = vsel %vm281, %v1040, 0
        %1044 = vmatpush.msra.mxu0 0.0
        %1045 = vmatpush.msra.mxu0 0.0
        %1046 = vmatpush.msra.mxu0 0.0
        %1047 = vmatpush.msra.mxu0 0.0
        %1048 = vmatpush.msra.mxu0 0.0
        %1049 = vmatpush.msra.mxu0 0.0
        %1050 = vmatpush.msra.mxu0 0.0
        %1051 = vmatpush.msra.mxu0 0.0
        %1052 = vmatpush.msra.mxu0 0.0
        %1053 = vmatpush.msra.mxu0 0.0
        %1054 = vmatpush.msra.mxu0 0.0
        %1055 = vmatpush.msra.mxu0 0.0
        %1056 = vmatpush.msra.mxu0 0.0
        %1057 = vmatpush.msra.mxu0 0.0
        %1058 = vmatpush.msra.mxu0 0.0
        %1059 = vmatpush.msra.mxu0 %v356
        %1060 = vmatmul.f32.gmra.mxu0 %v1042
        %v1061 = vpop.f32.mrf.mxu0
        %v1062 = vadd.f32 0.0, %v1061
        %1063 = vdwg.mxu0
        %1065 = vrot.lane.b32.xlu0 %v1062, 16
        %v1066 = vpop.permute.xlu0 %1065
        %v1068 = vsel %vm256, %v1000, %v1066
        %v1069 = vtanh.pop %v1068
        %v1070 = vsub.f32 %v1069, %v913
        %v1071 = vmul.f32 %v1070, %v1070
        %v1072 = vsel %vm229, %v1071, 0.0
        %v1073 = vrot.slane %v1072, 4
        %v1074 = vadd.f32 %v1072, %v1073
        %v1075 = vrot.slane %v1074, 2
        %v1076 = vadd.f32 %v1074, %v1075
        %v1077 = vrot.slane %v1076, 1
        %v1078 = vadd.f32 %v1076, %v1077
        %v1079 = vsel %vm229, %v1078, 0.0
        %1080 = vadd.xlane.f32.xlu0 %v1079
        %v1081 = vpop.xlane.xlu0 %1080
        %vm1082 = vcmp.gt.s32.totalorder %v917, 0
        %v1083 = vsel %vm1082, 1, 0
        %vm1084 = vcmp.eq.s32.totalorder %v1083, 1
        %v1085 = vsel %vm1084, %v913, %v1069
        %vm1086 = vcmp.lt.f32.partialorder %v1081, 1e-12
        %v1087 = vsel %vm1086, 1, 0
        %vm1088 = vcmp.gt.s32.totalorder %v917, %v1087
        %v1089 = vsel %vm1088, %v917, %v1087
        %v1091 = vsel %vm229, %v1085, 0
        %1093 = vmatpush.msra.mxu0 0.0
        %1094 = vmatpush.msra.mxu0 0.0
        %1095 = vmatpush.msra.mxu0 0.0
        %1096 = vmatpush.msra.mxu0 0.0
        %1097 = vmatpush.msra.mxu0 0.0
        %1098 = vmatpush.msra.mxu0 0.0
        %1099 = vmatpush.msra.mxu0 0.0
        %1100 = vmatpush.msra.mxu0 0.0
        %1101 = vmatpush.msra.mxu0 0.0
        %1102 = vmatpush.msra.mxu0 0.0
        %1103 = vmatpush.msra.mxu0 0.0
        %1104 = vmatpush.msra.mxu0 0.0
        %1105 = vmatpush.msra.mxu0 %v224
        %1106 = vmatpush.msra.mxu0 %v223
        %1107 = vmatpush.msra.mxu0 %v222
        %1108 = vmatpush.msra.mxu0 %v221
        %1109 = vmatmul.f32.gmra.mxu0 %v1091
        %v1110 = vpop.f32.mrf.mxu0
        %v1111 = vadd.f32 %v227, %v1110
        %1112 = vdwg.mxu0
        %1114 = vrot.lane.b32.xlu0 %v1111, 96
        %v1115 = vpop.permute.xlu0 %1114
        %v1116 = vsel %vm256, %v1111, 0
        %v1118 = vsel %vm256, %v1115, 0
        %1120 = vmatpush.xpose.msra.mxu0 0.0
        %1121 = vmatpush.xpose.msra.mxu0 0.0
        %1122 = vmatpush.xpose.msra.mxu0 0.0
        %1123 = vmatpush.xpose.msra.mxu0 0.0
        %1124 = vmatpush.xpose.msra.mxu0 0.0
        %1125 = vmatpush.xpose.msra.mxu0 0.0
        %1126 = vmatpush.xpose.msra.mxu0 0.0
        %1127 = vmatpush.xpose.msra.mxu0 0.0
        %1128 = vmatpush.xpose.msra.mxu0 0.0
        %1129 = vmatpush.xpose.msra.mxu0 0.0
        %1130 = vmatpush.xpose.msra.mxu0 0.0
        %1131 = vmatpush.xpose.msra.mxu0 0.0
        %1132 = vmatpush.xpose.msra.mxu0 0.0
        %1133 = vmatpush.xpose.msra.mxu0 0.0
        %1134 = vmatpush.xpose.msra.mxu0 0.0
        %1135 = vmatpush.xpose.msra.mxu0 %v1118
        %1136 = vmatmul.f32.gmra.mxu0 %v1116
        %v1137 = vpop.f32.mrf.mxu0
        %v1138 = vadd.f32 0.0, %v1137
        %1139 = vdwg.mxu0
        %v1140 = vsel %vm281, %v1138, -inf
        %1141 = vmax.xlane.f32.xlu0 %v1140
        %v1142 = vpop.xlane.xlu0 %1141
        %v1143 = vsub.f32 %v1138, %v1142
        %v1144 = vmul.f32 %v1143, 1.442695
        %v1145 = vpow.pop %v1144
        %v1146 = vsel %vm281, %v1145, 0.0
        %1147 = vadd.xlane.f32.xlu0 %v1146
        %v1148 = vpop.xlane.xlu0 %1147
        %v1149 = vrcp.pop %v1148
        %v1150 = vmul.f32 %v1145, %v1149
        %v1152 = vsel %vm281, %v1150, 0
        %1154 = vmatpush.msra.mxu0 0.0
        %1155 = vmatpush.msra.mxu0 0.0
        %1156 = vmatpush.msra.mxu0 0.0
        %1157 = vmatpush.msra.mxu0 0.0
        %1158 = vmatpush.msra.mxu0 0.0
        %1159 = vmatpush.msra.mxu0 0.0
        %1160 = vmatpush.msra.mxu0 0.0
        %1161 = vmatpush.msra.mxu0 0.0
        %1162 = vmatpush.msra.mxu0 0.0
        %1163 = vmatpush.msra.mxu0 0.0
        %1164 = vmatpush.msra.mxu0 0.0
        %1165 = vmatpush.msra.mxu0 0.0
        %1166 = vmatpush.msra.mxu0 0.0
        %1167 = vmatpush.msra.mxu0 0.0
        %1168 = vmatpush.msra.mxu0 0.0
        %1169 = vmatpush.msra.mxu0 %v220
        %1170 = vmatmul.f32.gmra.mxu0 %v1152
        %v1171 = vpop.f32.mrf.mxu0
        %v1172 = vadd.f32 0.0, %v1171
        %1173 = vdwg.mxu0
        %1174 = vrot.lane.b32.xlu0 %v1111, 112
        %v1175 = vpop.permute.xlu0 %1174
        %1176 = vrot.lane.b32.xlu0 %v1111, 80
        %v1177 = vpop.permute.xlu0 %1176
        %v1178 = vsel %vm256, %v1175, 0
        %v1180 = vsel %vm256, %v1177, 0
        %1182 = vmatpush.xpose.msra.mxu0 0.0
        %1183 = vmatpush.xpose.msra.mxu0 0.0
        %1184 = vmatpush.xpose.msra.mxu0 0.0
        %1185 = vmatpush.xpose.msra.mxu0 0.0
        %1186 = vmatpush.xpose.msra.mxu0 0.0
        %1187 = vmatpush.xpose.msra.mxu0 0.0
        %1188 = vmatpush.xpose.msra.mxu0 0.0
        %1189 = vmatpush.xpose.msra.mxu0 0.0
        %1190 = vmatpush.xpose.msra.mxu0 0.0
        %1191 = vmatpush.xpose.msra.mxu0 0.0
        %1192 = vmatpush.xpose.msra.mxu0 0.0
        %1193 = vmatpush.xpose.msra.mxu0 0.0
        %1194 = vmatpush.xpose.msra.mxu0 0.0
        %1195 = vmatpush.xpose.msra.mxu0 0.0
        %1196 = vmatpush.xpose.msra.mxu0 0.0
        %1197 = vmatpush.xpose.msra.mxu0 %v1180
        %1198 = vmatmul.f32.gmra.mxu0 %v1178
        %v1199 = vpop.f32.mrf.mxu0
        %v1200 = vadd.f32 0.0, %v1199
        %1201 = vdwg.mxu0
        %v1202 = vsel %vm281, %v1200, -inf
        %1203 = vmax.xlane.f32.xlu0 %v1202
        %v1204 = vpop.xlane.xlu0 %1203
        %v1205 = vsub.f32 %v1200, %v1204
        %v1206 = vmul.f32 %v1205, 1.442695
        %v1207 = vpow.pop %v1206
        %v1208 = vsel %vm281, %v1207, 0.0
        %1209 = vadd.xlane.f32.xlu0 %v1208
        %v1210 = vpop.xlane.xlu0 %1209
        %v1211 = vrcp.pop %v1210
        %v1212 = vmul.f32 %v1207, %v1211
        %v1214 = vsel %vm281, %v1212, 0
        %1216 = vmatpush.msra.mxu0 0.0
        %1217 = vmatpush.msra.mxu0 0.0
        %1218 = vmatpush.msra.mxu0 0.0
        %1219 = vmatpush.msra.mxu0 0.0
        %1220 = vmatpush.msra.mxu0 0.0
        %1221 = vmatpush.msra.mxu0 0.0
        %1222 = vmatpush.msra.mxu0 0.0
        %1223 = vmatpush.msra.mxu0 0.0
        %1224 = vmatpush.msra.mxu0 0.0
        %1225 = vmatpush.msra.mxu0 0.0
        %1226 = vmatpush.msra.mxu0 0.0
        %1227 = vmatpush.msra.mxu0 0.0
        %1228 = vmatpush.msra.mxu0 0.0
        %1229 = vmatpush.msra.mxu0 0.0
        %1230 = vmatpush.msra.mxu0 0.0
        %1231 = vmatpush.msra.mxu0 %v356
        %1232 = vmatmul.f32.gmra.mxu0 %v1214
        %v1233 = vpop.f32.mrf.mxu0
        %v1234 = vadd.f32 0.0, %v1233
        %1235 = vdwg.mxu0
        %1237 = vrot.lane.b32.xlu0 %v1234, 16
        %v1238 = vpop.permute.xlu0 %1237
        %v1240 = vsel %vm256, %v1172, %v1238
        %v1241 = vtanh.pop %v1240
        %v1242 = vsub.f32 %v1241, %v1085
        %v1243 = vmul.f32 %v1242, %v1242
        %v1244 = vsel %vm229, %v1243, 0.0
        %v1245 = vrot.slane %v1244, 4
        %v1246 = vadd.f32 %v1244, %v1245
        %v1247 = vrot.slane %v1246, 2
        %v1248 = vadd.f32 %v1246, %v1247
        %v1249 = vrot.slane %v1248, 1
        %v1250 = vadd.f32 %v1248, %v1249
        %v1251 = vsel %vm229, %v1250, 0.0
        %1252 = vadd.xlane.f32.xlu0 %v1251
        %v1253 = vpop.xlane.xlu0 %1252
        %vm1254 = vcmp.gt.s32.totalorder %v1089, 0
        %v1255 = vsel %vm1254, 1, 0
        %vm1256 = vcmp.eq.s32.totalorder %v1255, 1
        %v1257 = vsel %vm1256, %v1085, %v1241
        %vm1258 = vcmp.lt.f32.partialorder %v1253, 1e-12
        %v1259 = vsel %vm1258, 1, 0
        %vm1260 = vcmp.gt.s32.totalorder %v1089, %v1259
        %v1261 = vsel %vm1260, %v1089, %v1259
        %v1263 = vsel %vm229, %v1257, 0
        %1265 = vmatpush.msra.mxu0 0.0
        %1266 = vmatpush.msra.mxu0 0.0
        %1267 = vmatpush.msra.mxu0 0.0
        %1268 = vmatpush.msra.mxu0 0.0
        %1269 = vmatpush.msra.mxu0 0.0
        %1270 = vmatpush.msra.mxu0 0.0
        %1271 = vmatpush.msra.mxu0 0.0
        %1272 = vmatpush.msra.mxu0 0.0
        %1273 = vmatpush.msra.mxu0 0.0
        %1274 = vmatpush.msra.mxu0 0.0
        %1275 = vmatpush.msra.mxu0 0.0
        %1276 = vmatpush.msra.mxu0 0.0
        %1277 = vmatpush.msra.mxu0 %v224
        %1278 = vmatpush.msra.mxu0 %v223
        %1279 = vmatpush.msra.mxu0 %v222
        %1280 = vmatpush.msra.mxu0 %v221
        %1281 = vmatmul.f32.gmra.mxu0 %v1263
        %v1282 = vpop.f32.mrf.mxu0
        %v1283 = vadd.f32 %v227, %v1282
        %1284 = vdwg.mxu0
        %1286 = vrot.lane.b32.xlu0 %v1283, 96
        %v1287 = vpop.permute.xlu0 %1286
        %v1288 = vsel %vm256, %v1283, 0
        %v1290 = vsel %vm256, %v1287, 0
        %1292 = vmatpush.xpose.msra.mxu0 0.0
        %1293 = vmatpush.xpose.msra.mxu0 0.0
        %1294 = vmatpush.xpose.msra.mxu0 0.0
        %1295 = vmatpush.xpose.msra.mxu0 0.0
        %1296 = vmatpush.xpose.msra.mxu0 0.0
        %1297 = vmatpush.xpose.msra.mxu0 0.0
        %1298 = vmatpush.xpose.msra.mxu0 0.0
        %1299 = vmatpush.xpose.msra.mxu0 0.0
        %1300 = vmatpush.xpose.msra.mxu0 0.0
        %1301 = vmatpush.xpose.msra.mxu0 0.0
        %1302 = vmatpush.xpose.msra.mxu0 0.0
        %1303 = vmatpush.xpose.msra.mxu0 0.0
        %1304 = vmatpush.xpose.msra.mxu0 0.0
        %1305 = vmatpush.xpose.msra.mxu0 0.0
        %1306 = vmatpush.xpose.msra.mxu0 0.0
        %1307 = vmatpush.xpose.msra.mxu0 %v1290
        %1308 = vmatmul.f32.gmra.mxu0 %v1288
        %v1309 = vpop.f32.mrf.mxu0
        %v1310 = vadd.f32 0.0, %v1309
        %1311 = vdwg.mxu0
        %v1312 = vsel %vm281, %v1310, -inf
        %1313 = vmax.xlane.f32.xlu0 %v1312
        %v1314 = vpop.xlane.xlu0 %1313
        %v1315 = vsub.f32 %v1310, %v1314
        %v1316 = vmul.f32 %v1315, 1.442695
        %v1317 = vpow.pop %v1316
        %v1318 = vsel %vm281, %v1317, 0.0
        %1319 = vadd.xlane.f32.xlu0 %v1318
        %v1320 = vpop.xlane.xlu0 %1319
        %v1321 = vrcp.pop %v1320
        %v1322 = vmul.f32 %v1317, %v1321
        %v1324 = vsel %vm281, %v1322, 0
        %1326 = vmatpush.msra.mxu0 0.0
        %1327 = vmatpush.msra.mxu0 0.0
        %1328 = vmatpush.msra.mxu0 0.0
        %1329 = vmatpush.msra.mxu0 0.0
        %1330 = vmatpush.msra.mxu0 0.0
        %1331 = vmatpush.msra.mxu0 0.0
        %1332 = vmatpush.msra.mxu0 0.0
        %1333 = vmatpush.msra.mxu0 0.0
        %1334 = vmatpush.msra.mxu0 0.0
        %1335 = vmatpush.msra.mxu0 0.0
        %1336 = vmatpush.msra.mxu0 0.0
        %1337 = vmatpush.msra.mxu0 0.0
        %1338 = vmatpush.msra.mxu0 0.0
        %1339 = vmatpush.msra.mxu0 0.0
        %1340 = vmatpush.msra.mxu0 0.0
        %1341 = vmatpush.msra.mxu0 %v220
        %1342 = vmatmul.f32.gmra.mxu0 %v1324
        %v1343 = vpop.f32.mrf.mxu0
        %v1344 = vadd.f32 0.0, %v1343
        %1345 = vdwg.mxu0
        %1346 = vrot.lane.b32.xlu0 %v1283, 112
        %v1347 = vpop.permute.xlu0 %1346
        %1348 = vrot.lane.b32.xlu0 %v1283, 80
        %v1349 = vpop.permute.xlu0 %1348
        %v1350 = vsel %vm256, %v1347, 0
        %v1352 = vsel %vm256, %v1349, 0
        %1354 = vmatpush.xpose.msra.mxu0 0.0
        %1355 = vmatpush.xpose.msra.mxu0 0.0
        %1356 = vmatpush.xpose.msra.mxu0 0.0
        %1357 = vmatpush.xpose.msra.mxu0 0.0
        %1358 = vmatpush.xpose.msra.mxu0 0.0
        %1359 = vmatpush.xpose.msra.mxu0 0.0
        %1360 = vmatpush.xpose.msra.mxu0 0.0
        %1361 = vmatpush.xpose.msra.mxu0 0.0
        %1362 = vmatpush.xpose.msra.mxu0 0.0
        %1363 = vmatpush.xpose.msra.mxu0 0.0
        %1364 = vmatpush.xpose.msra.mxu0 0.0
        %1365 = vmatpush.xpose.msra.mxu0 0.0
        %1366 = vmatpush.xpose.msra.mxu0 0.0
        %1367 = vmatpush.xpose.msra.mxu0 0.0
        %1368 = vmatpush.xpose.msra.mxu0 0.0
        %1369 = vmatpush.xpose.msra.mxu0 %v1352
        %1370 = vmatmul.f32.gmra.mxu0 %v1350
        %v1371 = vpop.f32.mrf.mxu0
        %v1372 = vadd.f32 0.0, %v1371
        %1373 = vdwg.mxu0
        %v1374 = vsel %vm281, %v1372, -inf
        %1375 = vmax.xlane.f32.xlu0 %v1374
        %v1376 = vpop.xlane.xlu0 %1375
        %v1377 = vsub.f32 %v1372, %v1376
        %v1378 = vmul.f32 %v1377, 1.442695
        %v1379 = vpow.pop %v1378
        %v1380 = vsel %vm281, %v1379, 0.0
        %1381 = vadd.xlane.f32.xlu0 %v1380
        %v1382 = vpop.xlane.xlu0 %1381
        %v1383 = vrcp.pop %v1382
        %v1384 = vmul.f32 %v1379, %v1383
        %v1386 = vsel %vm281, %v1384, 0
        %1388 = vmatpush.msra.mxu0 0.0
        %1389 = vmatpush.msra.mxu0 0.0
        %1390 = vmatpush.msra.mxu0 0.0
        %1391 = vmatpush.msra.mxu0 0.0
        %1392 = vmatpush.msra.mxu0 0.0
        %1393 = vmatpush.msra.mxu0 0.0
        %1394 = vmatpush.msra.mxu0 0.0
        %1395 = vmatpush.msra.mxu0 0.0
        %1396 = vmatpush.msra.mxu0 0.0
        %1397 = vmatpush.msra.mxu0 0.0
        %1398 = vmatpush.msra.mxu0 0.0
        %1399 = vmatpush.msra.mxu0 0.0
        %1400 = vmatpush.msra.mxu0 0.0
        %1401 = vmatpush.msra.mxu0 0.0
        %1402 = vmatpush.msra.mxu0 0.0
        %1403 = vmatpush.msra.mxu0 %v356
        %1404 = vmatmul.f32.gmra.mxu0 %v1386
        %v1405 = vpop.f32.mrf.mxu0
        %v1406 = vadd.f32 0.0, %v1405
        %1407 = vdwg.mxu0
        %1409 = vrot.lane.b32.xlu0 %v1406, 16
        %v1410 = vpop.permute.xlu0 %1409
        %v1412 = vsel %vm256, %v1344, %v1410
        %v1413 = vtanh.pop %v1412
        %v1414 = vsub.f32 %v1413, %v1257
        %v1415 = vmul.f32 %v1414, %v1414
        %v1416 = vsel %vm229, %v1415, 0.0
        %v1417 = vrot.slane %v1416, 4
        %v1418 = vadd.f32 %v1416, %v1417
        %v1419 = vrot.slane %v1418, 2
        %v1420 = vadd.f32 %v1418, %v1419
        %v1421 = vrot.slane %v1420, 1
        %v1422 = vadd.f32 %v1420, %v1421
        %v1423 = vsel %vm229, %v1422, 0.0
        %1424 = vadd.xlane.f32.xlu0 %v1423
        %v1425 = vpop.xlane.xlu0 %1424
        %vm1426 = vcmp.gt.s32.totalorder %v1261, 0
        %v1427 = vsel %vm1426, 1, 0
        %vm1428 = vcmp.eq.s32.totalorder %v1427, 1
        %v1429 = vsel %vm1428, %v1257, %v1413
        %vm1430 = vcmp.lt.f32.partialorder %v1425, 1e-12
        %v1431 = vsel %vm1430, 1, 0
        %vm1432 = vcmp.gt.s32.totalorder %v1261, %v1431
        %v1433 = vsel %vm1432, %v1261, %v1431
        %v1435 = vsel %vm229, %v1429, 0
        %1437 = vmatpush.msra.mxu0 0.0
        %1438 = vmatpush.msra.mxu0 0.0
        %1439 = vmatpush.msra.mxu0 0.0
        %1440 = vmatpush.msra.mxu0 0.0
        %1441 = vmatpush.msra.mxu0 0.0
        %1442 = vmatpush.msra.mxu0 0.0
        %1443 = vmatpush.msra.mxu0 0.0
        %1444 = vmatpush.msra.mxu0 0.0
        %1445 = vmatpush.msra.mxu0 0.0
        %1446 = vmatpush.msra.mxu0 0.0
        %1447 = vmatpush.msra.mxu0 0.0
        %1448 = vmatpush.msra.mxu0 0.0
        %1449 = vmatpush.msra.mxu0 %v224
        %1450 = vmatpush.msra.mxu0 %v223
        %1451 = vmatpush.msra.mxu0 %v222
        %1452 = vmatpush.msra.mxu0 %v221
        %1453 = vmatmul.f32.gmra.mxu0 %v1435
        %v1454 = vpop.f32.mrf.mxu0
        %v1455 = vadd.f32 %v227, %v1454
        %1456 = vdwg.mxu0
        %1458 = vrot.lane.b32.xlu0 %v1455, 96
        %v1459 = vpop.permute.xlu0 %1458
        %v1460 = vsel %vm256, %v1455, 0
        %v1462 = vsel %vm256, %v1459, 0
        %1464 = vmatpush.xpose.msra.mxu0 0.0
        %1465 = vmatpush.xpose.msra.mxu0 0.0
        %1466 = vmatpush.xpose.msra.mxu0 0.0
        %1467 = vmatpush.xpose.msra.mxu0 0.0
        %1468 = vmatpush.xpose.msra.mxu0 0.0
        %1469 = vmatpush.xpose.msra.mxu0 0.0
        %1470 = vmatpush.xpose.msra.mxu0 0.0
        %1471 = vmatpush.xpose.msra.mxu0 0.0
        %1472 = vmatpush.xpose.msra.mxu0 0.0
        %1473 = vmatpush.xpose.msra.mxu0 0.0
        %1474 = vmatpush.xpose.msra.mxu0 0.0
        %1475 = vmatpush.xpose.msra.mxu0 0.0
        %1476 = vmatpush.xpose.msra.mxu0 0.0
        %1477 = vmatpush.xpose.msra.mxu0 0.0
        %1478 = vmatpush.xpose.msra.mxu0 0.0
        %1479 = vmatpush.xpose.msra.mxu0 %v1462
        %1480 = vmatmul.f32.gmra.mxu0 %v1460
        %v1481 = vpop.f32.mrf.mxu0
        %v1482 = vadd.f32 0.0, %v1481
        %1483 = vdwg.mxu0
        %v1484 = vsel %vm281, %v1482, -inf
        %1485 = vmax.xlane.f32.xlu0 %v1484
        %v1486 = vpop.xlane.xlu0 %1485
        %v1487 = vsub.f32 %v1482, %v1486
        %v1488 = vmul.f32 %v1487, 1.442695
        %v1489 = vpow.pop %v1488
        %v1490 = vsel %vm281, %v1489, 0.0
        %1491 = vadd.xlane.f32.xlu0 %v1490
        %v1492 = vpop.xlane.xlu0 %1491
        %v1493 = vrcp.pop %v1492
        %v1494 = vmul.f32 %v1489, %v1493
        %v1496 = vsel %vm281, %v1494, 0
        %1498 = vmatpush.msra.mxu0 0.0
        %1499 = vmatpush.msra.mxu0 0.0
        %1500 = vmatpush.msra.mxu0 0.0
        %1501 = vmatpush.msra.mxu0 0.0
        %1502 = vmatpush.msra.mxu0 0.0
        %1503 = vmatpush.msra.mxu0 0.0
        %1504 = vmatpush.msra.mxu0 0.0
        %1505 = vmatpush.msra.mxu0 0.0
        %1506 = vmatpush.msra.mxu0 0.0
        %1507 = vmatpush.msra.mxu0 0.0
        %1508 = vmatpush.msra.mxu0 0.0
        %1509 = vmatpush.msra.mxu0 0.0
        %1510 = vmatpush.msra.mxu0 0.0
        %1511 = vmatpush.msra.mxu0 0.0
        %1512 = vmatpush.msra.mxu0 0.0
        %1513 = vmatpush.msra.mxu0 %v220
        %1514 = vmatmul.f32.gmra.mxu0 %v1496
        %v1515 = vpop.f32.mrf.mxu0
        %v1516 = vadd.f32 0.0, %v1515
        %1517 = vdwg.mxu0
        %1518 = vrot.lane.b32.xlu0 %v1455, 112
        %v1519 = vpop.permute.xlu0 %1518
        %1520 = vrot.lane.b32.xlu0 %v1455, 80
        %v1521 = vpop.permute.xlu0 %1520
        %v1522 = vsel %vm256, %v1519, 0
        %v1524 = vsel %vm256, %v1521, 0
        %1526 = vmatpush.xpose.msra.mxu0 0.0
        %1527 = vmatpush.xpose.msra.mxu0 0.0
        %1528 = vmatpush.xpose.msra.mxu0 0.0
        %1529 = vmatpush.xpose.msra.mxu0 0.0
        %1530 = vmatpush.xpose.msra.mxu0 0.0
        %1531 = vmatpush.xpose.msra.mxu0 0.0
        %1532 = vmatpush.xpose.msra.mxu0 0.0
        %1533 = vmatpush.xpose.msra.mxu0 0.0
        %1534 = vmatpush.xpose.msra.mxu0 0.0
        %1535 = vmatpush.xpose.msra.mxu0 0.0
        %1536 = vmatpush.xpose.msra.mxu0 0.0
        %1537 = vmatpush.xpose.msra.mxu0 0.0
        %1538 = vmatpush.xpose.msra.mxu0 0.0
        %1539 = vmatpush.xpose.msra.mxu0 0.0
        %1540 = vmatpush.xpose.msra.mxu0 0.0
        %1541 = vmatpush.xpose.msra.mxu0 %v1524
        %1542 = vmatmul.f32.gmra.mxu0 %v1522
        %v1543 = vpop.f32.mrf.mxu0
        %v1544 = vadd.f32 0.0, %v1543
        %1545 = vdwg.mxu0
        %v1546 = vsel %vm281, %v1544, -inf
        %1547 = vmax.xlane.f32.xlu0 %v1546
        %v1548 = vpop.xlane.xlu0 %1547
        %v1549 = vsub.f32 %v1544, %v1548
        %v1550 = vmul.f32 %v1549, 1.442695
        %v1551 = vpow.pop %v1550
        %v1552 = vsel %vm281, %v1551, 0.0
        %1553 = vadd.xlane.f32.xlu0 %v1552
        %v1554 = vpop.xlane.xlu0 %1553
        %v1555 = vrcp.pop %v1554
        %v1556 = vmul.f32 %v1551, %v1555
        %v1558 = vsel %vm281, %v1556, 0
        %1560 = vmatpush.msra.mxu0 0.0
        %1561 = vmatpush.msra.mxu0 0.0
        %1562 = vmatpush.msra.mxu0 0.0
        %1563 = vmatpush.msra.mxu0 0.0
        %1564 = vmatpush.msra.mxu0 0.0
        %1565 = vmatpush.msra.mxu0 0.0
        %1566 = vmatpush.msra.mxu0 0.0
        %1567 = vmatpush.msra.mxu0 0.0
        %1568 = vmatpush.msra.mxu0 0.0
        %1569 = vmatpush.msra.mxu0 0.0
        %1570 = vmatpush.msra.mxu0 0.0
        %1571 = vmatpush.msra.mxu0 0.0
        %1572 = vmatpush.msra.mxu0 0.0
        %1573 = vmatpush.msra.mxu0 0.0
        %1574 = vmatpush.msra.mxu0 0.0
        %1575 = vmatpush.msra.mxu0 %v356
        %1576 = vmatmul.f32.gmra.mxu0 %v1558
        %v1577 = vpop.f32.mrf.mxu0
        %v1578 = vadd.f32 0.0, %v1577
        %1579 = vdwg.mxu0
        %1581 = vrot.lane.b32.xlu0 %v1578, 16
        %v1582 = vpop.permute.xlu0 %1581
        %v1584 = vsel %vm256, %v1516, %v1582
        %v1585 = vtanh.pop %v1584
        %v1586 = vsub.f32 %v1585, %v1429
        %v1587 = vmul.f32 %v1586, %v1586
        %v1588 = vsel %vm229, %v1587, 0.0
        %v1589 = vrot.slane %v1588, 4
        %v1590 = vadd.f32 %v1588, %v1589
        %v1591 = vrot.slane %v1590, 2
        %v1592 = vadd.f32 %v1590, %v1591
        %v1593 = vrot.slane %v1592, 1
        %v1594 = vadd.f32 %v1592, %v1593
        %v1595 = vsel %vm229, %v1594, 0.0
        %1596 = vadd.xlane.f32.xlu0 %v1595
        %v1597 = vpop.xlane.xlu0 %1596
        %vm1598 = vcmp.gt.s32.totalorder %v1433, 0
        %v1599 = vsel %vm1598, 1, 0
        %vm1600 = vcmp.eq.s32.totalorder %v1599, 1
        %v1601 = vsel %vm1600, %v1429, %v1585
        %vm1602 = vcmp.lt.f32.partialorder %v1597, 1e-12
        %v1603 = vsel %vm1602, 1, 0
        %vm1604 = vcmp.gt.s32.totalorder %v1433, %v1603
        %v1605 = vsel %vm1604, %v1433, %v1603
        %v1607 = vsel %vm229, %v1601, 0
        %1609 = vmatpush.msra.mxu0 0.0
        %1610 = vmatpush.msra.mxu0 0.0
        %1611 = vmatpush.msra.mxu0 0.0
        %1612 = vmatpush.msra.mxu0 0.0
        %1613 = vmatpush.msra.mxu0 0.0
        %1614 = vmatpush.msra.mxu0 0.0
        %1615 = vmatpush.msra.mxu0 0.0
        %1616 = vmatpush.msra.mxu0 0.0
        %1617 = vmatpush.msra.mxu0 0.0
        %1618 = vmatpush.msra.mxu0 0.0
        %1619 = vmatpush.msra.mxu0 0.0
        %1620 = vmatpush.msra.mxu0 0.0
        %1621 = vmatpush.msra.mxu0 %v224
        %1622 = vmatpush.msra.mxu0 %v223
        %1623 = vmatpush.msra.mxu0 %v222
        %1624 = vmatpush.msra.mxu0 %v221
        %1625 = vmatmul.f32.gmra.mxu0 %v1607
        %v1626 = vpop.f32.mrf.mxu0
        %v1627 = vadd.f32 %v227, %v1626
        %1628 = vdwg.mxu0
        %1630 = vrot.lane.b32.xlu0 %v1627, 96
        %v1631 = vpop.permute.xlu0 %1630
        %v1632 = vsel %vm256, %v1627, 0
        %v1634 = vsel %vm256, %v1631, 0
        %1636 = vmatpush.xpose.msra.mxu0 0.0
        %1637 = vmatpush.xpose.msra.mxu0 0.0
        %1638 = vmatpush.xpose.msra.mxu0 0.0
        %1639 = vmatpush.xpose.msra.mxu0 0.0
        %1640 = vmatpush.xpose.msra.mxu0 0.0
        %1641 = vmatpush.xpose.msra.mxu0 0.0
        %1642 = vmatpush.xpose.msra.mxu0 0.0
        %1643 = vmatpush.xpose.msra.mxu0 0.0
        %1644 = vmatpush.xpose.msra.mxu0 0.0
        %1645 = vmatpush.xpose.msra.mxu0 0.0
        %1646 = vmatpush.xpose.msra.mxu0 0.0
        %1647 = vmatpush.xpose.msra.mxu0 0.0
        %1648 = vmatpush.xpose.msra.mxu0 0.0
        %1649 = vmatpush.xpose.msra.mxu0 0.0
        %1650 = vmatpush.xpose.msra.mxu0 0.0
        %1651 = vmatpush.xpose.msra.mxu0 %v1634
        %1652 = vmatmul.f32.gmra.mxu0 %v1632
        %v1653 = vpop.f32.mrf.mxu0
        %v1654 = vadd.f32 0.0, %v1653
        %1655 = vdwg.mxu0
        %v1656 = vsel %vm281, %v1654, -inf
        %1657 = vmax.xlane.f32.xlu0 %v1656
        %v1658 = vpop.xlane.xlu0 %1657
        %v1659 = vsub.f32 %v1654, %v1658
        %v1660 = vmul.f32 %v1659, 1.442695
        %v1661 = vpow.pop %v1660
        %v1662 = vsel %vm281, %v1661, 0.0
        %1663 = vadd.xlane.f32.xlu0 %v1662
        %v1664 = vpop.xlane.xlu0 %1663
        %v1665 = vrcp.pop %v1664
        %v1666 = vmul.f32 %v1661, %v1665
        %v1668 = vsel %vm281, %v1666, 0
        %1670 = vmatpush.msra.mxu0 0.0
        %1671 = vmatpush.msra.mxu0 0.0
        %1672 = vmatpush.msra.mxu0 0.0
        %1673 = vmatpush.msra.mxu0 0.0
        %1674 = vmatpush.msra.mxu0 0.0
        %1675 = vmatpush.msra.mxu0 0.0
        %1676 = vmatpush.msra.mxu0 0.0
        %1677 = vmatpush.msra.mxu0 0.0
        %1678 = vmatpush.msra.mxu0 0.0
        %1679 = vmatpush.msra.mxu0 0.0
        %1680 = vmatpush.msra.mxu0 0.0
        %1681 = vmatpush.msra.mxu0 0.0
        %1682 = vmatpush.msra.mxu0 0.0
        %1683 = vmatpush.msra.mxu0 0.0
        %1684 = vmatpush.msra.mxu0 0.0
        %1685 = vmatpush.msra.mxu0 %v220
        %1686 = vmatmul.f32.gmra.mxu0 %v1668
        %v1687 = vpop.f32.mrf.mxu0
        %v1688 = vadd.f32 0.0, %v1687
        %1689 = vdwg.mxu0
        %1690 = vrot.lane.b32.xlu0 %v1627, 112
        %v1691 = vpop.permute.xlu0 %1690
        %1692 = vrot.lane.b32.xlu0 %v1627, 80
        %v1693 = vpop.permute.xlu0 %1692
        %v1694 = vsel %vm256, %v1691, 0
        %v1696 = vsel %vm256, %v1693, 0
        %1698 = vmatpush.xpose.msra.mxu0 0.0
        %1699 = vmatpush.xpose.msra.mxu0 0.0
        %1700 = vmatpush.xpose.msra.mxu0 0.0
        %1701 = vmatpush.xpose.msra.mxu0 0.0
        %1702 = vmatpush.xpose.msra.mxu0 0.0
        %1703 = vmatpush.xpose.msra.mxu0 0.0
        %1704 = vmatpush.xpose.msra.mxu0 0.0
        %1705 = vmatpush.xpose.msra.mxu0 0.0
        %1706 = vmatpush.xpose.msra.mxu0 0.0
        %1707 = vmatpush.xpose.msra.mxu0 0.0
        %1708 = vmatpush.xpose.msra.mxu0 0.0
        %1709 = vmatpush.xpose.msra.mxu0 0.0
        %1710 = vmatpush.xpose.msra.mxu0 0.0
        %1711 = vmatpush.xpose.msra.mxu0 0.0
        %1712 = vmatpush.xpose.msra.mxu0 0.0
        %1713 = vmatpush.xpose.msra.mxu0 %v1696
        %1714 = vmatmul.f32.gmra.mxu0 %v1694
        %v1715 = vpop.f32.mrf.mxu0
        %v1716 = vadd.f32 0.0, %v1715
        %1717 = vdwg.mxu0
        %v1718 = vsel %vm281, %v1716, -inf
        %1719 = vmax.xlane.f32.xlu0 %v1718
        %v1720 = vpop.xlane.xlu0 %1719
        %v1721 = vsub.f32 %v1716, %v1720
        %v1722 = vmul.f32 %v1721, 1.442695
        %v1723 = vpow.pop %v1722
        %v1724 = vsel %vm281, %v1723, 0.0
        %1725 = vadd.xlane.f32.xlu0 %v1724
        %v1726 = vpop.xlane.xlu0 %1725
        %v1727 = vrcp.pop %v1726
        %v1728 = vmul.f32 %v1723, %v1727
        %v1730 = vsel %vm281, %v1728, 0
        %1732 = vmatpush.msra.mxu0 0.0
        %1733 = vmatpush.msra.mxu0 0.0
        %1734 = vmatpush.msra.mxu0 0.0
        %1735 = vmatpush.msra.mxu0 0.0
        %1736 = vmatpush.msra.mxu0 0.0
        %1737 = vmatpush.msra.mxu0 0.0
        %1738 = vmatpush.msra.mxu0 0.0
        %1739 = vmatpush.msra.mxu0 0.0
        %1740 = vmatpush.msra.mxu0 0.0
        %1741 = vmatpush.msra.mxu0 0.0
        %1742 = vmatpush.msra.mxu0 0.0
        %1743 = vmatpush.msra.mxu0 0.0
        %1744 = vmatpush.msra.mxu0 0.0
        %1745 = vmatpush.msra.mxu0 0.0
        %1746 = vmatpush.msra.mxu0 0.0
        %1747 = vmatpush.msra.mxu0 %v356
        %1748 = vmatmul.f32.gmra.mxu0 %v1730
        %v1749 = vpop.f32.mrf.mxu0
        %v1750 = vadd.f32 0.0, %v1749
        %1751 = vdwg.mxu0
        %1753 = vrot.lane.b32.xlu0 %v1750, 16
        %v1754 = vpop.permute.xlu0 %1753
        %v1756 = vsel %vm256, %v1688, %v1754
        %v1757 = vtanh.pop %v1756
        %v1758 = vsub.f32 %v1757, %v1601
        %v1759 = vmul.f32 %v1758, %v1758
        %v1760 = vsel %vm229, %v1759, 0.0
        %v1761 = vrot.slane %v1760, 4
        %v1762 = vadd.f32 %v1760, %v1761
        %v1763 = vrot.slane %v1762, 2
        %v1764 = vadd.f32 %v1762, %v1763
        %v1765 = vrot.slane %v1764, 1
        %v1766 = vadd.f32 %v1764, %v1765
        %v1767 = vsel %vm229, %v1766, 0.0
        %1768 = vadd.xlane.f32.xlu0 %v1767
        %v1769 = vpop.xlane.xlu0 %1768
        %vm1770 = vcmp.gt.s32.totalorder %v1605, 0
        %v1771 = vsel %vm1770, 1, 0
        %vm1772 = vcmp.eq.s32.totalorder %v1771, 1
        %v1773 = vsel %vm1772, %v1601, %v1757
        %vm1774 = vcmp.lt.f32.partialorder %v1769, 1e-12
        %v1775 = vsel %vm1774, 1, 0
        %vm1776 = vcmp.gt.s32.totalorder %v1605, %v1775
        %v1777 = vsel %vm1776, %v1605, %v1775
        %v1779 = vsel %vm229, %v1773, 0
        %1781 = vmatpush.msra.mxu0 0.0
        %1782 = vmatpush.msra.mxu0 0.0
        %1783 = vmatpush.msra.mxu0 0.0
        %1784 = vmatpush.msra.mxu0 0.0
        %1785 = vmatpush.msra.mxu0 0.0
        %1786 = vmatpush.msra.mxu0 0.0
        %1787 = vmatpush.msra.mxu0 0.0
        %1788 = vmatpush.msra.mxu0 0.0
        %1789 = vmatpush.msra.mxu0 0.0
        %1790 = vmatpush.msra.mxu0 0.0
        %1791 = vmatpush.msra.mxu0 0.0
        %1792 = vmatpush.msra.mxu0 0.0
        %1793 = vmatpush.msra.mxu0 %v224
        %1794 = vmatpush.msra.mxu0 %v223
        %1795 = vmatpush.msra.mxu0 %v222
        %1796 = vmatpush.msra.mxu0 %v221
        %1797 = vmatmul.f32.gmra.mxu0 %v1779
        %v1798 = vpop.f32.mrf.mxu0
        %v1799 = vadd.f32 %v227, %v1798
        %1800 = vdwg.mxu0
        %1802 = vrot.lane.b32.xlu0 %v1799, 96
        %v1803 = vpop.permute.xlu0 %1802
        %v1804 = vsel %vm256, %v1799, 0
        %v1806 = vsel %vm256, %v1803, 0
        %1808 = vmatpush.xpose.msra.mxu0 0.0
        %1809 = vmatpush.xpose.msra.mxu0 0.0
        %1810 = vmatpush.xpose.msra.mxu0 0.0
        %1811 = vmatpush.xpose.msra.mxu0 0.0
        %1812 = vmatpush.xpose.msra.mxu0 0.0
        %1813 = vmatpush.xpose.msra.mxu0 0.0
        %1814 = vmatpush.xpose.msra.mxu0 0.0
        %1815 = vmatpush.xpose.msra.mxu0 0.0
        %1816 = vmatpush.xpose.msra.mxu0 0.0
        %1817 = vmatpush.xpose.msra.mxu0 0.0
        %1818 = vmatpush.xpose.msra.mxu0 0.0
        %1819 = vmatpush.xpose.msra.mxu0 0.0
        %1820 = vmatpush.xpose.msra.mxu0 0.0
        %1821 = vmatpush.xpose.msra.mxu0 0.0
        %1822 = vmatpush.xpose.msra.mxu0 0.0
        %1823 = vmatpush.xpose.msra.mxu0 %v1806
        %1824 = vmatmul.f32.gmra.mxu0 %v1804
        %v1825 = vpop.f32.mrf.mxu0
        %v1826 = vadd.f32 0.0, %v1825
        %1827 = vdwg.mxu0
        %v1828 = vsel %vm281, %v1826, -inf
        %1829 = vmax.xlane.f32.xlu0 %v1828
        %v1830 = vpop.xlane.xlu0 %1829
        %v1831 = vsub.f32 %v1826, %v1830
        %v1832 = vmul.f32 %v1831, 1.442695
        %v1833 = vpow.pop %v1832
        %v1834 = vsel %vm281, %v1833, 0.0
        %1835 = vadd.xlane.f32.xlu0 %v1834
        %v1836 = vpop.xlane.xlu0 %1835
        %v1837 = vrcp.pop %v1836
        %v1838 = vmul.f32 %v1833, %v1837
        %v1840 = vsel %vm281, %v1838, 0
        %1842 = vmatpush.msra.mxu0 0.0
        %1843 = vmatpush.msra.mxu0 0.0
        %1844 = vmatpush.msra.mxu0 0.0
        %1845 = vmatpush.msra.mxu0 0.0
        %1846 = vmatpush.msra.mxu0 0.0
        %1847 = vmatpush.msra.mxu0 0.0
        %1848 = vmatpush.msra.mxu0 0.0
        %1849 = vmatpush.msra.mxu0 0.0
        %1850 = vmatpush.msra.mxu0 0.0
        %1851 = vmatpush.msra.mxu0 0.0
        %1852 = vmatpush.msra.mxu0 0.0
        %1853 = vmatpush.msra.mxu0 0.0
        %1854 = vmatpush.msra.mxu0 0.0
        %1855 = vmatpush.msra.mxu0 0.0
        %1856 = vmatpush.msra.mxu0 0.0
        %1857 = vmatpush.msra.mxu0 %v220
        %1858 = vmatmul.f32.gmra.mxu0 %v1840
        %v1859 = vpop.f32.mrf.mxu0
        %v1860 = vadd.f32 0.0, %v1859
        %1861 = vdwg.mxu0
        %1862 = vrot.lane.b32.xlu0 %v1799, 112
        %v1863 = vpop.permute.xlu0 %1862
        %1864 = vrot.lane.b32.xlu0 %v1799, 80
        %v1865 = vpop.permute.xlu0 %1864
        %v1866 = vsel %vm256, %v1863, 0
        %v1868 = vsel %vm256, %v1865, 0
        %1870 = vmatpush.xpose.msra.mxu0 0.0
        %1871 = vmatpush.xpose.msra.mxu0 0.0
        %1872 = vmatpush.xpose.msra.mxu0 0.0
        %1873 = vmatpush.xpose.msra.mxu0 0.0
        %1874 = vmatpush.xpose.msra.mxu0 0.0
        %1875 = vmatpush.xpose.msra.mxu0 0.0
        %1876 = vmatpush.xpose.msra.mxu0 0.0
        %1877 = vmatpush.xpose.msra.mxu0 0.0
        %1878 = vmatpush.xpose.msra.mxu0 0.0
        %1879 = vmatpush.xpose.msra.mxu0 0.0
        %1880 = vmatpush.xpose.msra.mxu0 0.0
        %1881 = vmatpush.xpose.msra.mxu0 0.0
        %1882 = vmatpush.xpose.msra.mxu0 0.0
        %1883 = vmatpush.xpose.msra.mxu0 0.0
        %1884 = vmatpush.xpose.msra.mxu0 0.0
        %1885 = vmatpush.xpose.msra.mxu0 %v1868
        %1886 = vmatmul.f32.gmra.mxu0 %v1866
        %v1887 = vpop.f32.mrf.mxu0
        %v1888 = vadd.f32 0.0, %v1887
        %1889 = vdwg.mxu0
        %v1890 = vsel %vm281, %v1888, -inf
        %1891 = vmax.xlane.f32.xlu0 %v1890
        %v1892 = vpop.xlane.xlu0 %1891
        %v1893 = vsub.f32 %v1888, %v1892
        %v1894 = vmul.f32 %v1893, 1.442695
        %v1895 = vpow.pop %v1894
        %v1896 = vsel %vm281, %v1895, 0.0
        %1897 = vadd.xlane.f32.xlu0 %v1896
        %v1898 = vpop.xlane.xlu0 %1897
        %v1899 = vrcp.pop %v1898
        %v1900 = vmul.f32 %v1895, %v1899
        %v1902 = vsel %vm281, %v1900, 0
        %1904 = vmatpush.msra.mxu0 0.0
        %1905 = vmatpush.msra.mxu0 0.0
        %1906 = vmatpush.msra.mxu0 0.0
        %1907 = vmatpush.msra.mxu0 0.0
        %1908 = vmatpush.msra.mxu0 0.0
        %1909 = vmatpush.msra.mxu0 0.0
        %1910 = vmatpush.msra.mxu0 0.0
        %1911 = vmatpush.msra.mxu0 0.0
        %1912 = vmatpush.msra.mxu0 0.0
        %1913 = vmatpush.msra.mxu0 0.0
        %1914 = vmatpush.msra.mxu0 0.0
        %1915 = vmatpush.msra.mxu0 0.0
        %1916 = vmatpush.msra.mxu0 0.0
        %1917 = vmatpush.msra.mxu0 0.0
        %1918 = vmatpush.msra.mxu0 0.0
        %1919 = vmatpush.msra.mxu0 %v356
        %1920 = vmatmul.f32.gmra.mxu0 %v1902
        %v1921 = vpop.f32.mrf.mxu0
        %v1922 = vadd.f32 0.0, %v1921
        %1923 = vdwg.mxu0
        %1925 = vrot.lane.b32.xlu0 %v1922, 16
        %v1926 = vpop.permute.xlu0 %1925
        %v1928 = vsel %vm256, %v1860, %v1926
        %v1929 = vtanh.pop %v1928
        %vm1930 = vcmp.gt.s32.totalorder %v1777, 0
        %v1931 = vsel %vm1930, 1, 0
        %vm1932 = vcmp.eq.s32.totalorder %v1931, 1
        %v1933 = vsel %vm1932, %v1773, %v1929
        %v1934 = vld [vmem:[%s3] sm:$0xff]
        %v1935 = vld [vmem:[%s3 + $0x8] sm:$0xff]
        %v1936 = vld [vmem:[%s3 + $0x10] sm:$0xff]
        %v1937 = vld [vmem:[%s3 + $0x18] sm:$0xff]
        %v1938 = vld [vmem:[%s4] sm:$0x1]
        %v1940 = vperm.slane %v1938, 0
        %v1943 = vsel %vm229, %v1933, 0
        %1945 = vmatpush.msra.mxu0 0.0
        %1946 = vmatpush.msra.mxu0 0.0
        %1947 = vmatpush.msra.mxu0 0.0
        %1948 = vmatpush.msra.mxu0 0.0
        %1949 = vmatpush.msra.mxu0 0.0
        %1950 = vmatpush.msra.mxu0 0.0
        %1951 = vmatpush.msra.mxu0 0.0
        %1952 = vmatpush.msra.mxu0 0.0
        %1953 = vmatpush.msra.mxu0 0.0
        %1954 = vmatpush.msra.mxu0 0.0
        %1955 = vmatpush.msra.mxu0 0.0
        %1956 = vmatpush.msra.mxu0 0.0
        %1957 = vmatpush.msra.mxu0 %v1937
        %1958 = vmatpush.msra.mxu0 %v1936
        %1959 = vmatpush.msra.mxu0 %v1935
        %1960 = vmatpush.msra.mxu0 %v1934
        %1961 = vmatmul.f32.gmra.mxu0 %v1943
        %v1962 = vpop.f32.mrf.mxu0
        %v1963 = vadd.f32 %v1940, %v1962
        %1964 = vdwg.mxu0
        %v1965 = vadd.f32 %v1963, %v220
        %v1966 = vtanh.pop %v1965
        %1967 = vst.msk [vmem:[%s215] sm:$0xff] %vm229, %v1966
        %s1968 = sand.u32 %s137, 1
        %s1969 = scalar_lea.sflag [#allocation3], %s1968
        %s1970 = sand.u32 %s137, 1
        %s1971 = smul.addr %s1970, 8
        %s1972 = scalar_lea.vmem [#allocation2], %s1971
        // Predicated region
        $region41: #{fixed_point_self_attention.1} parent=39 // pred_check
          %p1973 = pneg %p147
        $region42: #{fixed_point_self_attention.1} parent=39 // pred_check_branch
          %1975 = sbr.rel (%p1973) target = $region44
        $region43: #{fixed_point_self_attention.1} parent=39 // pred_region
          %1977 = vsyncadd %s1969, 0
          %s1978 = smul.addr %s19, 8
          %s1979 = scalar_lea.hbm %s5, %s1978
          %s1981 = sshll.u32 %s1972, 4
          %s1982 = int_to_ptr.vmem [resolvable:$true] %s1981
          %s1983 = sshll.u32 %s1979, 4
          %s1984 = int_to_ptr.hbm [resolvable:$true] %s1983
          %1986 = dma.vmem_to_hbm [thread:$0]  %s1982, 128, %s1984, %s1969
        $region44: #{fixed_point_self_attention.1} parent=39 // pred_fallthru
          _
      $region40: #{fixed_point_self_attention.1} parent=5 // pred_fallthru
        _
      %p1987 = scmp.le.s32.totalorder 2, %s14
      // Predicated region
      $region45: #{fixed_point_self_attention.1} parent=5 // pred_check
        %p1988 = pneg %p1987
      $region46: #{fixed_point_self_attention.1} parent=5 // pred_check_branch
        %1990 = sbr.rel (%p1988) target = $region48
      $region47: #{fixed_point_self_attention.1} parent=5 // pred_region
        %s1991 = ssub.s32 %s14, 2
        // Predicated region
        $region49: #{fixed_point_self_attention.1} parent=47 // pred_check
          %p1992 = pneg %p153
        $region50: #{fixed_point_self_attention.1} parent=47 // pred_check_branch
          %1994 = sbr.rel (%p1992) target = $region52
        $region51: #{fixed_point_self_attention.1} parent=47 // pred_region
          %s1995 = sand.u32 %s138, 1
          %s1996 = scalar_lea.sflag [#allocation3], %s1995
          %s1997 = sand.u32 %s138, 1
          %s1998 = smul.addr %s1997, 8
          %s1999 = scalar_lea.vmem [#allocation2], %s1998
          %2001 = dma.done %s1996, 128
        $region52: #{fixed_point_self_attention.1} parent=47 // pred_fallthru
          _
      $region48: #{fixed_point_self_attention.1} parent=5 // pred_fallthru
        _
    $region6: #{fixed_point_self_attention.1} parent=1 // loop_footer
      %s18 = sadd.s32 1, %s14
    $region7: #{fixed_point_self_attention.1} parent=1 // loop_footer_branch
      %13 = sbr.rel target = $region3
    $region8: #{fixed_point_self_attention.1} parent=1 // loop_exit
      _
    %2002 = vsyncpa [#allocation3], 1
    %s2003 = scalar_lea.sflag [#allocation3], 1
    %2004 = vsyncpa %s2003, 1

</llo_original>
